<compile_context>
chip_gen: v7x
topology: tpu7x:2x2x1
jax: 0.10.0
libtpu: 0.0.40
codegen_flags: <defaults>
</compile_context>

<pallas_src>
import functools

import numpy as np
import jax
import jax.numpy as jnp
from jax.experimental import pallas as pl
from jax.experimental.pallas import tpu as pltpu


def _round_up(n, m):
    return ((n + m - 1) // m) * m


def _use_batch_grid():
    """True on chips with 2 TensorCores (v7x): keep the parallel batch grid so
    each core takes one batch element.  False on single-TC v5e/v6e, where a
    batch grid is only a serial loop paying per-step overhead."""
    try:
        kind = jax.devices()[0].device_kind.lower()
    except Exception:
        return False
    return ("v7" in kind) or ("7x" in kind)


# ---------------------------------------------------------------------------
# Kernel A (v5e/v6e): single program over all B*S rows.
#   embed (one-hot matmul) -> per-batch RMSNorm -> Linear -> ReLU -> Linear
# ---------------------------------------------------------------------------
def _fused_kernel_folded(idx_ref, emb_ref, scale_ref, w1_ref, b1_ref,
                         w2_ref, b2_ref, o_ref, *, B, S, inv_sd):
    BS = B * S
    Vp = emb_ref.shape[0]

    ids = idx_ref[...]                                          # (BS, 1) int32
    vocab_iota = jax.lax.broadcasted_iota(jnp.int32, (BS, Vp), 1)
    onehot = (vocab_iota == ids).astype(jnp.float32)            # (BS, Vp)
    # Exact row gather via one-hot matmul; precision pinned so the f32
    # embedding values are not perturbed by reduced-precision passes.
    x = jnp.dot(onehot, emb_ref[...],
                precision=jax.lax.Precision.HIGHEST,
                preferred_element_type=jnp.float32)              # (BS, D)

    # Per-batch-element RMS (torch: ||x_b||_F * (S*D)^(-1/2) over dims (1,2)).
    row_sq = jnp.sum(x * x, axis=-1, keepdims=True)              # (BS, 1)
    row_id = jax.lax.broadcasted_iota(jnp.int32, (BS, 1), 0)
    inv_rows = jnp.zeros((BS, 1), jnp.float32)
    for b in range(B):                                           # static, tiny
        m = (row_id >= b * S) & (row_id < (b + 1) * S)
        ssum = jnp.sum(jnp.where(m, row_sq, 0.0), keepdims=True)  # (1, 1)
        inv_rows = jnp.where(m, jax.lax.rsqrt(ssum * inv_sd), inv_rows)
    xn = x * inv_rows * scale_ref[...]                           # (BS, D) f32

    # Linear(D,D) -> ReLU -> Linear(D,Vp); bf16 operands, f32 accumulation.
    h = jnp.dot(xn.astype(jnp.bfloat16), w1_ref[...],
                preferred_element_type=jnp.float32) + b1_ref[...]
    h = jnp.maximum(h, 0.0)
    o_ref[...] = (jnp.dot(h.astype(jnp.bfloat16), w2_ref[...],
                          preferred_element_type=jnp.float32) + b2_ref[...])


# ---------------------------------------------------------------------------
# Kernel B (v7x): one grid program = one batch element (grid sharded over TCs).
# ---------------------------------------------------------------------------
def _fused_kernel_grid(idx_ref, emb_ref, scale_ref, w1_ref, b1_ref,
                       w2_ref, b2_ref, o_ref, *, inv_sd):
    ids = idx_ref[0]                                             # (S, 1) int32
    S = ids.shape[0]
    Vp = emb_ref.shape[0]

    vocab_iota = jax.lax.broadcasted_iota(jnp.int32, (S, Vp), 1)
    onehot = (vocab_iota == ids).astype(jnp.float32)             # (S, Vp)
    x = jnp.dot(onehot, emb_ref[...],
                precision=jax.lax.Precision.HIGHEST,
                preferred_element_type=jnp.float32)              # (S, D)

    ssum = jnp.sum(x * x, keepdims=True)                         # (1, 1)
    inv_rms = jax.lax.rsqrt(ssum * inv_sd)
    xn = x * inv_rms * scale_ref[...]                            # (S, D) f32

    h = jnp.dot(xn.astype(jnp.bfloat16), w1_ref[...],
                preferred_element_type=jnp.float32) + b1_ref[...]
    h = jnp.maximum(h, 0.0)
    o_ref[0] = (jnp.dot(h.astype(jnp.bfloat16), w2_ref[...],
                        preferred_element_type=jnp.float32) + b2_ref[...])


# ---------------------------------------------------------------------------
# Host wrapper
# ---------------------------------------------------------------------------
def simple_model_rms_forward(idx, params, fold_batch=None):
    """idx: (B, S) integer tokens; returns logits (B, S, V) float32."""
    B, S = idx.shape
    emb = jnp.asarray(params["emb"], jnp.float32)                # (V, D)
    V, D = emb.shape
    Vp = _round_up(V, 128)                                       # lane-dense vocab

    # Host-side layout plumbing (no compute hoisting):
    #   pad vocab dim with zeros, pre-transpose weights, store matmul weights
    #   as bf16, keep biases/scale in f32.
    scale = jnp.asarray(params["scale"], jnp.float32)[:S, :]     # (S, D)
    w1_t = jnp.asarray(params["w1"], jnp.float32).T.astype(jnp.bfloat16)   # (D, D)
    b1 = jnp.asarray(params["b1"], jnp.float32).reshape(1, D)
    w2_t = jnp.zeros((D, Vp), jnp.bfloat16).at[:, :V].set(
        jnp.asarray(params["w2"], jnp.float32).T.astype(jnp.bfloat16))     # (D, Vp)
    b2 = jnp.zeros((1, Vp), jnp.float32).at[:, :V].set(
        jnp.asarray(params["b2"], jnp.float32))                            # (1, Vp)
    emb_p = jnp.zeros((Vp, D), jnp.float32).at[:V, :].set(emb)             # (Vp, D)

    if fold_batch is None:
        fold_batch = not _use_batch_grid()

    inv_sd = 1.0 / float(S * D)

    if fold_batch:
        # Single program over all B*S rows (v5e/v6e path).
        idx2 = idx.astype(jnp.int32).reshape(B * S, 1)
        scale_t = jnp.tile(scale, (B, 1))                        # (B*S, D)
        kern = functools.partial(_fused_kernel_folded, B=B, S=S, inv_sd=inv_sd)
        out = pl.pallas_call(
            kern,
            out_shape=jax.ShapeDtypeStruct((B * S, Vp), jnp.float32),
            grid_spec=pltpu.PrefetchScalarGridSpec(
                num_scalar_prefetch=0,
                grid=(1,),
                in_specs=[
                    pl.BlockSpec((B * S, 1), lambda i: (0, 0)),  # token ids
                    pl.BlockSpec((Vp, D), lambda i: (0, 0)),     # emb (padded)
                    pl.BlockSpec((B * S, D), lambda i: (0, 0)),  # scale (tiled)
                    pl.BlockSpec((D, D), lambda i: (0, 0)),      # W1^T (bf16)
                    pl.BlockSpec((1, D), lambda i: (0, 0)),      # b1
                    pl.BlockSpec((D, Vp), lambda i: (0, 0)),     # W2^T (bf16, padded)
                    pl.BlockSpec((1, Vp), lambda i: (0, 0)),     # b2 (padded)
                ],
                out_specs=pl.BlockSpec((B * S, Vp), lambda i: (0, 0)),
            ),
            compiler_params=pltpu.CompilerParams(
                dimension_semantics=("arbitrary",)),
        )(idx2, emb_p, scale_t, w1_t, b1, w2_t, b2)
        logits = out.reshape(B, S, Vp)
    else:
        # Per-batch grid, sharded one element per TensorCore (v7x path).
        idx3 = idx.astype(jnp.int32).reshape(B, S, 1)
        kern = functools.partial(_fused_kernel_grid, inv_sd=inv_sd)
        logits = pl.pallas_call(
            kern,
            out_shape=jax.ShapeDtypeStruct((B, S, Vp), jnp.float32),
            grid_spec=pltpu.PrefetchScalarGridSpec(
                num_scalar_prefetch=0,
                grid=(B,),
                in_specs=[
                    pl.BlockSpec((1, S, 1), lambda b: (b, 0, 0)),  # token ids
                    pl.BlockSpec((Vp, D), lambda b: (0, 0)),       # emb (padded)
                    pl.BlockSpec((S, D), lambda b: (0, 0)),        # scale
                    pl.BlockSpec((D, D), lambda b: (0, 0)),        # W1^T (bf16)
                    pl.BlockSpec((1, D), lambda b: (0, 0)),        # b1
                    pl.BlockSpec((D, Vp), lambda b: (0, 0)),       # W2^T (bf16)
                    pl.BlockSpec((1, Vp), lambda b: (0, 0)),       # b2
                ],
                out_specs=pl.BlockSpec((1, S, Vp), lambda b: (b, 0, 0)),
            ),
            compiler_params=pltpu.CompilerParams(
                dimension_semantics=("parallel",)),
        )(idx3, emb_p, scale, w1_t, b1, w2_t, b2)

    return logits[..., :V]


# ---------------------------------------------------------------------------
# NumPy references (correctness checking only)
# ---------------------------------------------------------------------------
def _round_bf16(a):
    """Round-trip an array through bfloat16 (for the matched reference)."""
    return np.asarray(jnp.asarray(a, jnp.float32).astype(jnp.bfloat16)).astype(np.float64)


def simple_model_rms_reference(idx, params, *, bf16_matmuls):
    """Float64 reference of the torch module.  bf16_matmuls=True mirrors the
    kernel's bf16 rounding of the two linear-layer matmul operands."""
    emb = np.asarray(params["emb"], np.float64)
    scale = np.asarray(params["scale"], np.float64)
    w1 = np.asarray(params["w1"], np.float64)
    b1 = np.asarray(params["b1"], np.float64)
    w2 = np.asarray(params["w2"], np.float64)
    b2 = np.asarray(params["b2"], np.float64)

    x = emb[np.asarray(idx)]                                     # (B, S, D)
    B, S, D = x.shape
    ff_rms = np.sqrt((x * x).sum(axis=(1, 2))) * (S * D) ** (-0.5)
    xn = scale[:S][None, :, :] * (x / ff_rms[:, None, None])

    a1, m1 = (( _round_bf16(xn), _round_bf16(w1)) if bf16_matmuls else (xn, w1))
    h = np.maximum(a1 @ m1.T + b1, 0.0)
    a2, m2 = ((_round_bf16(h), _round_bf16(w2)) if bf16_matmuls else (h, w2))
    return a2 @ m2.T + b2


if __name__ == "__main__":
    # Small shapes consistent with the module config
    # (d_model=128, context_window=64, char vocab ~65 symbols).
    B, S, D, V = 2, 64, 128, 65

    key = jax.random.PRNGKey(0)
    k_idx, k_emb, k_sc, k_w1, k_b1, k_w2, k_b2 = jax.random.split(key, 7)

    idx = jax.random.randint(k_idx, (B, S), 0, V, dtype=jnp.int32)
    lin_bound = 1.0 / np.sqrt(D)
    params = {
        "emb": jax.random.normal(k_emb, (V, D), jnp.float32),
        # RMSNorm scale (init is ones in torch; perturb to exercise it)
        "scale": 1.0 + 0.1 * jax.random.normal(k_sc, (S, D), jnp.float32),
        "w1": jax.random.uniform(k_w1, (D, D), jnp.float32, -lin_bound, lin_bound),
        "b1": jax.random.uniform(k_b1, (D,), jnp.float32, -lin_bound, lin_bound),
        "w2": jax.random.uniform(k_w2, (V, D), jnp.float32, -lin_bound, lin_bound),
        "b2": jax.random.uniform(k_b2, (V,), jnp.float32, -lin_bound, lin_bound),
    }

    # References: exact f32/f64 math of the torch module, and a version that
    # mirrors the kernel's bf16 matmul-operand rounding.
    ref_exact = simple_model_rms_reference(idx, params, bf16_matmuls=False)
    ref_match = simple_model_rms_reference(idx, params, bf16_matmuls=True)

    # Run BOTH code paths (folded single-program and per-batch grid) so the
    # script validates them regardless of which chip generation it runs on,
    # then the auto-selected path to exercise the chip gating.
    out_fold = jax.block_until_ready(simple_model_rms_forward(idx, params, fold_batch=True))
    out_grid = jax.block_until_ready(simple_model_rms_forward(idx, params, fold_batch=False))
    out_auto = jax.block_until_ready(simple_model_rms_forward(idx, params))

    for out in (out_fold, out_grid, out_auto):
        assert out.shape == (B, S, V)
        o64 = np.asarray(out, np.float64)
        # Tight check vs the bf16-matmul-matched reference.
        np.testing.assert_allclose(o64, ref_match, rtol=2e-3, atol=2e-3)
        # Looser sanity check vs the exact f32 torch-module math (bf16 matmul
        # operands are the only deliberate deviation).
        np.testing.assert_allclose(o64, ref_exact, rtol=2e-2, atol=2e-2)

    print("KERNEL_OK")
</pallas_src>

<mosaic_0001>
module attributes {stable_mosaic.version = 11 : i64} {
  func.func @_fused_kernel_folded(%arg0: i32, %arg1: memref<128x1xi32, #tpu.memory_space<vmem>>, %arg2: memref<128x128xf32, #tpu.memory_space<vmem>>, %arg3: memref<128x128xf32, #tpu.memory_space<vmem>>, %arg4: memref<128x128xbf16, #tpu.memory_space<vmem>>, %arg5: memref<1x128xf32, #tpu.memory_space<vmem>>, %arg6: memref<128x128xbf16, #tpu.memory_space<vmem>>, %arg7: memref<1x128xf32, #tpu.memory_space<vmem>>, %arg8: memref<128x128xf32, #tpu.memory_space<vmem>>) attributes {dimension_semantics = [#tpu.dimension_semantics<arbitrary>], iteration_bounds = array<i64: 1>, scalar_prefetch = 0 : i64, scratch_operands = 0 : i64, tpu.core_type = #tpu.core_type<tc>, window_params = [{pipeline_mode = #tpu.pipeline_mode<synchronous>, transform_indices = @transform_0, window_bounds = array<i64: 128, 1>}, {pipeline_mode = #tpu.pipeline_mode<synchronous>, transform_indices = @transform_1, window_bounds = array<i64: 128, 128>}, {pipeline_mode = #tpu.pipeline_mode<synchronous>, transform_indices = @transform_2, window_bounds = array<i64: 128, 128>}, {pipeline_mode = #tpu.pipeline_mode<synchronous>, transform_indices = @transform_3, window_bounds = array<i64: 128, 128>}, {pipeline_mode = #tpu.pipeline_mode<synchronous>, transform_indices = @transform_4, window_bounds = array<i64: 1, 128>}, {pipeline_mode = #tpu.pipeline_mode<synchronous>, transform_indices = @transform_5, window_bounds = array<i64: 128, 128>}, {pipeline_mode = #tpu.pipeline_mode<synchronous>, transform_indices = @transform_6, window_bounds = array<i64: 1, 128>}, {pipeline_mode = #tpu.pipeline_mode<synchronous>, transform_indices = @transform_7, window_bounds = array<i64: 128, 128>}]} {
    %c0 = arith.constant 0 : index
    %c0_0 = arith.constant 0 : index
    %0 = vector.load %arg1[%c0, %c0_0] : memref<128x1xi32, #tpu.memory_space<vmem>>, vector<128x1xi32>
    %1 = tpu.iota {dimensions = array<i32: 1>} : vector<128x128xi32>
    %2 = vector.broadcast %0 : vector<128x1xi32> to vector<128x128xi32>
    %3 = arith.cmpi eq, %1, %2 : vector<128x128xi32>
    %4 = arith.extui %3 : vector<128x128xi1> to vector<128x128xi32>
    %5 = arith.sitofp %4 : vector<128x128xi32> to vector<128x128xf32>
    %c0_1 = arith.constant 0 : index
    %c0_2 = arith.constant 0 : index
    %6 = vector.load %arg2[%c0_1, %c0_2] : memref<128x128xf32, #tpu.memory_space<vmem>>, vector<128x128xf32>
    %cst = arith.constant dense<0.000000e+00> : vector<128x128xf32>
    %7 = tpu.matmul %5, %6, %cst {dimension_numbers = #tpu.dot_dimension_numbers<[1], [0], [0], [1], [0, 0, 1, 1], [], []>, precision = #tpu.contract_precision<fp32>} : vector<128x128xf32>, vector<128x128xf32>, vector<128x128xf32> -> vector<128x128xf32>
    %8 = arith.mulf %7, %7 : vector<128x128xf32>
    %cst_3 = arith.constant dense<0.000000e+00> : vector<128xf32>
    %9 = vector.multi_reduction <add>, %8, %cst_3 [1] : vector<128x128xf32> to vector<128xf32>
    %10 = vector.shape_cast %9 : vector<128xf32> to vector<128x1xf32>
    %11 = tpu.iota {dimensions = array<i32: 0>} : vector<128x1xi32>
    %cst_4 = arith.constant 0.000000e+00 : f32
    %12 = vector.broadcast %cst_4 : f32 to vector<128x1xf32>
    %c0_i32 = arith.constant 0 : i32
    %13 = vector.broadcast %c0_i32 : i32 to vector<128x1xi32>
    %14 = arith.cmpi sge, %11, %13 : vector<128x1xi32>
    %c64_i32 = arith.constant 64 : i32
    %15 = vector.broadcast %c64_i32 : i32 to vector<128x1xi32>
    %16 = arith.cmpi slt, %11, %15 : vector<128x1xi32>
    %17 = arith.andi %14, %16 : vector<128x1xi1>
    %cst_5 = arith.constant 0.000000e+00 : f32
    %18 = vector.broadcast %cst_5 : f32 to vector<128x1xf32>
    %19 = arith.select %17, %10, %18 : vector<128x1xi1>, vector<128x1xf32>
    %20 = vector.shape_cast %19 : vector<128x1xf32> to vector<1x128x1xf32>
    %cst_6 = arith.constant dense<0.000000e+00> : vector<1xf32>
    %21 = vector.multi_reduction <add>, %20, %cst_6 [1, 2] : vector<1x128x1xf32> to vector<1xf32>
    %22 = vector.shape_cast %21 : vector<1xf32> to vector<1x1x1xf32>
    %23 = vector.extract %22[0, 0, 0] : f32 from vector<1x1x1xf32>
    %24 = vector.broadcast %23 : f32 to vector<1x1xf32>
    %cst_7 = arith.constant 1.22070313E-4 : f32
    %25 = vector.broadcast %cst_7 : f32 to vector<1x1xf32>
    %26 = arith.mulf %24, %25 : vector<1x1xf32>
    %27 = math.rsqrt %26 : vector<1x1xf32>
    %28 = vector.shape_cast %27 : vector<1x1xf32> to vector<1x1xf32>
    %29 = vector.broadcast %28 : vector<1x1xf32> to vector<128x1xf32>
    %30 = arith.select %17, %29, %12 : vector<128x1xi1>, vector<128x1xf32>
    %c64_i32_8 = arith.constant 64 : i32
    %31 = vector.broadcast %c64_i32_8 : i32 to vector<128x1xi32>
    %32 = arith.cmpi sge, %11, %31 : vector<128x1xi32>
    %c128_i32 = arith.constant 128 : i32
    %33 = vector.broadcast %c128_i32 : i32 to vector<128x1xi32>
    %34 = arith.cmpi slt, %11, %33 : vector<128x1xi32>
    %35 = arith.andi %32, %34 : vector<128x1xi1>
    %cst_9 = arith.constant 0.000000e+00 : f32
    %36 = vector.broadcast %cst_9 : f32 to vector<128x1xf32>
    %37 = arith.select %35, %10, %36 : vector<128x1xi1>, vector<128x1xf32>
    %38 = vector.shape_cast %37 : vector<128x1xf32> to vector<1x128x1xf32>
    %cst_10 = arith.constant dense<0.000000e+00> : vector<1xf32>
    %39 = vector.multi_reduction <add>, %38, %cst_10 [1, 2] : vector<1x128x1xf32> to vector<1xf32>
    %40 = vector.shape_cast %39 : vector<1xf32> to vector<1x1x1xf32>
    %41 = vector.extract %40[0, 0, 0] : f32 from vector<1x1x1xf32>
    %42 = vector.broadcast %41 : f32 to vector<1x1xf32>
    %cst_11 = arith.constant 1.22070313E-4 : f32
    %43 = vector.broadcast %cst_11 : f32 to vector<1x1xf32>
    %44 = arith.mulf %42, %43 : vector<1x1xf32>
    %45 = math.rsqrt %44 : vector<1x1xf32>
    %46 = vector.shape_cast %45 : vector<1x1xf32> to vector<1x1xf32>
    %47 = vector.broadcast %46 : vector<1x1xf32> to vector<128x1xf32>
    %48 = arith.select %35, %47, %30 : vector<128x1xi1>, vector<128x1xf32>
    %49 = vector.broadcast %48 : vector<128x1xf32> to vector<128x128xf32>
    %50 = arith.mulf %7, %49 : vector<128x128xf32>
    %c0_12 = arith.constant 0 : index
    %c0_13 = arith.constant 0 : index
    %51 = vector.load %arg3[%c0_12, %c0_13] : memref<128x128xf32, #tpu.memory_space<vmem>>, vector<128x128xf32>
    %52 = arith.mulf %50, %51 : vector<128x128xf32>
    %53 = arith.truncf %52 : vector<128x128xf32> to vector<128x128xbf16>
    %c0_14 = arith.constant 0 : index
    %c0_15 = arith.constant 0 : index
    %54 = vector.load %arg4[%c0_14, %c0_15] : memref<128x128xbf16, #tpu.memory_space<vmem>>, vector<128x128xbf16>
    %cst_16 = arith.constant dense<0.000000e+00> : vector<128x128xf32>
    %55 = tpu.matmul %53, %54, %cst_16 {dimension_numbers = #tpu.dot_dimension_numbers<[1], [0], [0], [1], [0, 0, 1, 1], [], []>} : vector<128x128xbf16>, vector<128x128xbf16>, vector<128x128xf32> -> vector<128x128xf32>
    %c0_17 = arith.constant 0 : index
    %c0_18 = arith.constant 0 : index
    %56 = vector.load %arg5[%c0_17, %c0_18] : memref<1x128xf32, #tpu.memory_space<vmem>>, vector<1x128xf32>
    %57 = vector.broadcast %56 : vector<1x128xf32> to vector<128x128xf32>
    %58 = arith.addf %55, %57 : vector<128x128xf32>
    %cst_19 = arith.constant 0.000000e+00 : f32
    %59 = vector.broadcast %cst_19 : f32 to vector<128x128xf32>
    %60 = arith.maximumf %58, %59 : vector<128x128xf32>
    %61 = arith.truncf %60 : vector<128x128xf32> to vector<128x128xbf16>
    %c0_20 = arith.constant 0 : index
    %c0_21 = arith.constant 0 : index
    %62 = vector.load %arg6[%c0_20, %c0_21] : memref<128x128xbf16, #tpu.memory_space<vmem>>, vector<128x128xbf16>
    %cst_22 = arith.constant dense<0.000000e+00> : vector<128x128xf32>
    %63 = tpu.matmul %61, %62, %cst_22 {dimension_numbers = #tpu.dot_dimension_numbers<[1], [0], [0], [1], [0, 0, 1, 1], [], []>} : vector<128x128xbf16>, vector<128x128xbf16>, vector<128x128xf32> -> vector<128x128xf32>
    %c0_23 = arith.constant 0 : index
    %c0_24 = arith.constant 0 : index
    %64 = vector.load %arg7[%c0_23, %c0_24] : memref<1x128xf32, #tpu.memory_space<vmem>>, vector<1x128xf32>
    %65 = vector.broadcast %64 : vector<1x128xf32> to vector<128x128xf32>
    %66 = arith.addf %63, %65 : vector<128x128xf32>
    %c0_25 = arith.constant 0 : index
    %c0_26 = arith.constant 0 : index
    %67 = vector.load %arg8[%c0_25, %c0_26] : memref<128x128xf32, #tpu.memory_space<vmem>>, vector<128x128xf32>
    tpu.vector_store %arg8[%c0_25, %c0_26], %66 {strides = array<i32>} : memref<128x128xf32, #tpu.memory_space<vmem>>, vector<128x128xf32>,
    return
  }
  func.func @transform_0(%arg0: i32) -> (i32, i32) {
    %c0_i32 = arith.constant 0 : i32
    %c0_i32_0 = arith.constant 0 : i32
    %c0_i32_1 = arith.constant 0 : i32
    return %c0_i32, %c0_i32_0 : i32, i32
  }
  func.func @transform_1(%arg0: i32) -> (i32, i32) {
    %c0_i32 = arith.constant 0 : i32
    %c0_i32_0 = arith.constant 0 : i32
    %c0_i32_1 = arith.constant 0 : i32
    return %c0_i32, %c0_i32_0 : i32, i32
  }
  func.func @transform_2(%arg0: i32) -> (i32, i32) {
    %c0_i32 = arith.constant 0 : i32
    %c0_i32_0 = arith.constant 0 : i32
    %c0_i32_1 = arith.constant 0 : i32
    return %c0_i32, %c0_i32_0 : i32, i32
  }
  func.func @transform_3(%arg0: i32) -> (i32, i32) {
    %c0_i32 = arith.constant 0 : i32
    %c0_i32_0 = arith.constant 0 : i32
    %c0_i32_1 = arith.constant 0 : i32
    return %c0_i32, %c0_i32_0 : i32, i32
  }
  func.func @transform_4(%arg0: i32) -> (i32, i32) {
    %c0_i32 = arith.constant 0 : i32
    %c0_i32_0 = arith.constant 0 : i32
    %c0_i32_1 = arith.constant 0 : i32
    return %c0_i32, %c0_i32_0 : i32, i32
  }
  func.func @transform_5(%arg0: i32) -> (i32, i32) {
    %c0_i32 = arith.constant 0 : i32
    %c0_i32_0 = arith.constant 0 : i32
    %c0_i32_1 = arith.constant 0 : i32
    return %c0_i32, %c0_i32_0 : i32, i32
  }
  func.func @transform_6(%arg0: i32) -> (i32, i32) {
    %c0_i32 = arith.constant 0 : i32
    %c0_i32_0 = arith.constant 0 : i32
    %c0_i32_1 = arith.constant 0 : i32
    return %c0_i32, %c0_i32_0 : i32, i32
  }
  func.func @transform_7(%arg0: i32) -> (i32, i32) {
    %c0_i32 = arith.constant 0 : i32
    %c0_i32_0 = arith.constant 0 : i32
    %c0_i32_1 = arith.constant 0 : i32
    return %c0_i32, %c0_i32_0 : i32, i32
  }
}

</mosaic_0001>

<llo_original>
// kernel: tpu_custom_call.1
$region0: #{tpu_custom_call.1}
  #allocation0 [shape = 'u32[]', space=smem, size = 0x4, offset = 0x4, fixed_abs, tag = 'smem constant byte address 0x4 - core index']
  #allocation1 [shape = 'u32[144,128]{1,0:T(1,128)}', space=vmem, size = 0x12000, scoped, tag = 'internal scratch']
  %s0 = inlined_call_operand.vmem [shape: s32[128,1], index: 0, kind: input, shape index: {}]
  %s1 = inlined_call_operand.vmem [shape: f32[128,128], index: 1, kind: input, shape index: {}]
  %s2 = inlined_call_operand.hbm [shape: f32[128,128], index: 2, kind: input, shape index: {}]
  %s3 = inlined_call_operand.hbm [shape: bf16[128,128], index: 3, kind: input, shape index: {}]
  %s4 = inlined_call_operand.vmem [shape: f32[1,128], index: 4, kind: input, shape index: {}]
  %s5 = inlined_call_operand.hbm [shape: bf16[128,128], index: 5, kind: input, shape index: {}]
  %s6 = inlined_call_operand.vmem [shape: f32[1,128], index: 6, kind: input, shape index: {}]
  %s7 = inlined_call_operand.hbm [shape: f32[128,128], index: 7, kind: output, shape index: {}]
  %s8 = sld [smem:[#allocation0]]
  $region50: #{tpu_custom_call.1} parent=0
    _
  %s10 = ssub.s32 1, %s8
  %s11 = scalar_select 0, %s10, %s8
  $region1: #{tpu_custom_call.1} parent=0
    #allocation2 [shape = 'u8[65536]{0}', space=vmem, size = 0x10000, scoped, tag = 'input window, operand 2, single buffered']
    #allocation3 [shape = 's32[1]{0}', space=sflag, size = 0x4, scoped, tag = 'scoped memory for tpu_custom_call.1']
    #allocation4 [shape = 's32[1]{0}', space=sflag, size = 0x4, scoped, tag = 'scoped memory for tpu_custom_call.1']
    #allocation5 [shape = 'u8[32768]{0}', space=vmem, size = 0x8000, scoped, tag = 'input window, operand 3, single buffered']
    #allocation6 [shape = 's32[1]{0}', space=sflag, size = 0x4, scoped, tag = 'scoped memory for tpu_custom_call.1']
    #allocation7 [shape = 'u8[32768]{0}', space=vmem, size = 0x8000, scoped, tag = 'input window, operand 5, single buffered']
    #allocation8 [shape = 'u8[65536]{0}', space=vmem, size = 0x10000, scoped, tag = 'output window, operand 0, single buffered']
    %12 = vsyncpa [#allocation3], 0
    %13 = vsyncpa [#allocation6], 0
    %14 = vsyncpa [#allocation4], 0
    // Predicated region
    $region2: #{tpu_custom_call.1} parent=1 // pred_check
      _
    $region3: #{tpu_custom_call.1} parent=1 // pred_check_branch
      %16 = sbr.rel (0) target = $region5
    $region4: #{tpu_custom_call.1} parent=1 // pred_region
      _
    $region5: #{tpu_custom_call.1} parent=1 // pred_fallthru
      _
    // Predicated region
    $region6: #{tpu_custom_call.1} parent=1 // pred_check
      _
    $region7: #{tpu_custom_call.1} parent=1 // pred_check_branch
      %18 = sbr.rel (0) target = $region9
    $region8: #{tpu_custom_call.1} parent=1 // pred_region
      _
    $region9: #{tpu_custom_call.1} parent=1 // pred_fallthru
      _
    // Predicated region
    $region10: #{tpu_custom_call.1} parent=1 // pred_check
      _
    $region11: #{tpu_custom_call.1} parent=1 // pred_check_branch
      %20 = sbr.rel (0) target = $region13
    $region12: #{tpu_custom_call.1} parent=1 // pred_region
      %s22 = ssub.s32 2048, 2048
      %23 = vsyncadd [#allocation3], %s22
      %s24 = sshll.u32 [#allocation2], 4
      %s25 = int_to_ptr.vmem [resolvable:$true] %s24
      %30 = dma.hbm_to_vmem [thread:$0]  %s2, 2048, %s25, [#allocation3], 128, 128, 8
    $region13: #{tpu_custom_call.1} parent=1 // pred_fallthru
      _
    // Predicated region
    $region14: #{tpu_custom_call.1} parent=1 // pred_check
      _
    $region15: #{tpu_custom_call.1} parent=1 // pred_check_branch
      %32 = sbr.rel (0) target = $region17
    $region16: #{tpu_custom_call.1} parent=1 // pred_region
      %s34 = ssub.s32 1024, 1024
      %35 = vsyncadd [#allocation6], %s34
      %s36 = sshll.u32 [#allocation5], 4
      %s37 = int_to_ptr.vmem [resolvable:$true] %s36
      %42 = dma.hbm_to_vmem [thread:$0]  %s3, 1024, %s37, [#allocation6], 64, 64, 4
    $region17: #{tpu_custom_call.1} parent=1 // pred_fallthru
      _
    // Predicated region
    $region18: #{tpu_custom_call.1} parent=1 // pred_check
      _
    $region19: #{tpu_custom_call.1} parent=1 // pred_check_branch
      %44 = sbr.rel (0) target = $region21
    $region20: #{tpu_custom_call.1} parent=1 // pred_region
      _
    $region21: #{tpu_custom_call.1} parent=1 // pred_fallthru
      _
    // Predicated region
    $region22: #{tpu_custom_call.1} parent=1 // pred_check
      _
    $region23: #{tpu_custom_call.1} parent=1 // pred_check_branch
      %46 = sbr.rel (0) target = $region25
    $region24: #{tpu_custom_call.1} parent=1 // pred_region
      %s48 = ssub.s32 1024, 1024
      %49 = vsyncadd [#allocation6], %s48
      %s50 = sshll.u32 [#allocation7], 4
      %s51 = int_to_ptr.vmem [resolvable:$true] %s50
      %56 = dma.hbm_to_vmem [thread:$0]  %s5, 1024, %s51, [#allocation6], 64, 64, 4
    $region25: #{tpu_custom_call.1} parent=1 // pred_fallthru
      _
    // Predicated region
    $region26: #{tpu_custom_call.1} parent=1 // pred_check
      _
    $region27: #{tpu_custom_call.1} parent=1 // pred_check_branch
      %58 = sbr.rel (0) target = $region29
    $region28: #{tpu_custom_call.1} parent=1 // pred_region
      _
    $region29: #{tpu_custom_call.1} parent=1 // pred_fallthru
      _
    // Predicated region
    $region30: #{tpu_custom_call.1} parent=1 // pred_check
      _
    $region31: #{tpu_custom_call.1} parent=1 // pred_check_branch
      %60 = sbr.rel (0) target = $region33
    $region32: #{tpu_custom_call.1} parent=1 // pred_region
      %61 = dma.done [#allocation3], 2048
    $region33: #{tpu_custom_call.1} parent=1 // pred_fallthru
      _
    // Predicated region
    $region34: #{tpu_custom_call.1} parent=1 // pred_check
      _
    $region35: #{tpu_custom_call.1} parent=1 // pred_check_branch
      %63 = sbr.rel (0) target = $region37
    $region36: #{tpu_custom_call.1} parent=1 // pred_region
      %64 = dma.done [#allocation6], 1024
    $region37: #{tpu_custom_call.1} parent=1 // pred_fallthru
      _
    // Predicated region
    $region38: #{tpu_custom_call.1} parent=1 // pred_check
      _
    $region39: #{tpu_custom_call.1} parent=1 // pred_check_branch
      %66 = sbr.rel (0) target = $region41
    $region40: #{tpu_custom_call.1} parent=1 // pred_region
      %67 = dma.done [#allocation6], 1024
    $region41: #{tpu_custom_call.1} parent=1 // pred_fallthru
      _
    %v69 = vld [vmem:[%s0] sm:$0xff]
    %v70 = vld [vmem:[%s0 + $0x8] sm:$0xff]
    %v71 = vld [vmem:[%s0 + $0x10] sm:$0xff]
    %v72 = vld [vmem:[%s0 + $0x18] sm:$0xff]
    %v73 = vld [vmem:[%s0 + $0x20] sm:$0xff]
    %v74 = vld [vmem:[%s0 + $0x28] sm:$0xff]
    %v75 = vld [vmem:[%s0 + $0x30] sm:$0xff]
    %v76 = vld [vmem:[%s0 + $0x38] sm:$0xff]
    %v77 = vld [vmem:[%s0 + $0x40] sm:$0xff]
    %v78 = vld [vmem:[%s0 + $0x48] sm:$0xff]
    %v79 = vld [vmem:[%s0 + $0x50] sm:$0xff]
    %v80 = vld [vmem:[%s0 + $0x58] sm:$0xff]
    %v81 = vld [vmem:[%s0 + $0x60] sm:$0xff]
    %v82 = vld [vmem:[%s0 + $0x68] sm:$0xff]
    %v83 = vld [vmem:[%s0 + $0x70] sm:$0xff]
    %v84 = vld [vmem:[%s0 + $0x78] sm:$0xff]
    %v85 = vlaneseq
    %v86 = vand.u32 %v85, 127
    %87 = vset.pattern.permute.xlu0 0
    %88 = vperm.xlu0 %87, %v69
    %v89 = vpop.permute.xlu0 %88
    %90 = vset.pattern.permute.xlu0 0
    %91 = vperm.xlu0 %90, %v70
    %v92 = vpop.permute.xlu0 %91
    %93 = vset.pattern.permute.xlu0 0
    %94 = vperm.xlu0 %93, %v71
    %v95 = vpop.permute.xlu0 %94
    %96 = vset.pattern.permute.xlu0 0
    %97 = vperm.xlu0 %96, %v72
    %v98 = vpop.permute.xlu0 %97
    %99 = vset.pattern.permute.xlu0 0
    %100 = vperm.xlu0 %99, %v73
    %v101 = vpop.permute.xlu0 %100
    %102 = vset.pattern.permute.xlu0 0
    %103 = vperm.xlu0 %102, %v74
    %v104 = vpop.permute.xlu0 %103
    %105 = vset.pattern.permute.xlu0 0
    %106 = vperm.xlu0 %105, %v75
    %v107 = vpop.permute.xlu0 %106
    %108 = vset.pattern.permute.xlu0 0
    %109 = vperm.xlu0 %108, %v76
    %v110 = vpop.permute.xlu0 %109
    %111 = vset.pattern.permute.xlu0 0
    %112 = vperm.xlu0 %111, %v77
    %v113 = vpop.permute.xlu0 %112
    %114 = vset.pattern.permute.xlu0 0
    %115 = vperm.xlu0 %114, %v78
    %v116 = vpop.permute.xlu0 %115
    %117 = vset.pattern.permute.xlu0 0
    %118 = vperm.xlu0 %117, %v79
    %v119 = vpop.permute.xlu0 %118
    %120 = vset.pattern.permute.xlu0 0
    %121 = vperm.xlu0 %120, %v80
    %v122 = vpop.permute.xlu0 %121
    %123 = vset.pattern.permute.xlu0 0
    %124 = vperm.xlu0 %123, %v81
    %v125 = vpop.permute.xlu0 %124
    %126 = vset.pattern.permute.xlu0 0
    %127 = vperm.xlu0 %126, %v82
    %v128 = vpop.permute.xlu0 %127
    %129 = vset.pattern.permute.xlu0 0
    %130 = vperm.xlu0 %129, %v83
    %v131 = vpop.permute.xlu0 %130
    %132 = vset.pattern.permute.xlu0 0
    %133 = vperm.xlu0 %132, %v84
    %v134 = vpop.permute.xlu0 %133
    %vm135 = vcmp.eq.s32.totalorder %v86, %v89
    %vm136 = vcmp.eq.s32.totalorder %v86, %v92
    %vm137 = vcmp.eq.s32.totalorder %v86, %v95
    %vm138 = vcmp.eq.s32.totalorder %v86, %v98
    %vm139 = vcmp.eq.s32.totalorder %v86, %v101
    %vm140 = vcmp.eq.s32.totalorder %v86, %v104
    %vm141 = vcmp.eq.s32.totalorder %v86, %v107
    %vm142 = vcmp.eq.s32.totalorder %v86, %v110
    %vm143 = vcmp.eq.s32.totalorder %v86, %v113
    %vm144 = vcmp.eq.s32.totalorder %v86, %v116
    %vm145 = vcmp.eq.s32.totalorder %v86, %v119
    %vm146 = vcmp.eq.s32.totalorder %v86, %v122
    %vm147 = vcmp.eq.s32.totalorder %v86, %v125
    %vm148 = vcmp.eq.s32.totalorder %v86, %v128
    %vm149 = vcmp.eq.s32.totalorder %v86, %v131
    %vm150 = vcmp.eq.s32.totalorder %v86, %v134
    %v151 = vsel %vm135, 1, 0
    %v152 = vsel %vm136, 1, 0
    %v153 = vsel %vm137, 1, 0
    %v154 = vsel %vm138, 1, 0
    %v155 = vsel %vm139, 1, 0
    %v156 = vsel %vm140, 1, 0
    %v157 = vsel %vm141, 1, 0
    %v158 = vsel %vm142, 1, 0
    %v159 = vsel %vm143, 1, 0
    %v160 = vsel %vm144, 1, 0
    %v161 = vsel %vm145, 1, 0
    %v162 = vsel %vm146, 1, 0
    %v163 = vsel %vm147, 1, 0
    %v164 = vsel %vm148, 1, 0
    %v165 = vsel %vm149, 1, 0
    %v166 = vsel %vm150, 1, 0
    %v167 = vcvt.s32.f32 %v151
    %v168 = vcvt.s32.f32 %v152
    %v169 = vcvt.s32.f32 %v153
    %v170 = vcvt.s32.f32 %v154
    %v171 = vcvt.s32.f32 %v155
    %v172 = vcvt.s32.f32 %v156
    %v173 = vcvt.s32.f32 %v157
    %v174 = vcvt.s32.f32 %v158
    %v175 = vcvt.s32.f32 %v159
    %v176 = vcvt.s32.f32 %v160
    %v177 = vcvt.s32.f32 %v161
    %v178 = vcvt.s32.f32 %v162
    %v179 = vcvt.s32.f32 %v163
    %v180 = vcvt.s32.f32 %v164
    %v181 = vcvt.s32.f32 %v165
    %v182 = vcvt.s32.f32 %v166
    %v183 = vld [vmem:[%s1] sm:$0xff]
    %v184 = vld [vmem:[%s1 + $0x8] sm:$0xff]
    %v185 = vld [vmem:[%s1 + $0x10] sm:$0xff]
    %v186 = vld [vmem:[%s1 + $0x18] sm:$0xff]
    %v187 = vld [vmem:[%s1 + $0x20] sm:$0xff]
    %v188 = vld [vmem:[%s1 + $0x28] sm:$0xff]
    %v189 = vld [vmem:[%s1 + $0x30] sm:$0xff]
    %v190 = vld [vmem:[%s1 + $0x38] sm:$0xff]
    %v191 = vld [vmem:[%s1 + $0x40] sm:$0xff]
    %v192 = vld [vmem:[%s1 + $0x48] sm:$0xff]
    %v193 = vld [vmem:[%s1 + $0x50] sm:$0xff]
    %v194 = vld [vmem:[%s1 + $0x58] sm:$0xff]
    %v195 = vld [vmem:[%s1 + $0x60] sm:$0xff]
    %v196 = vld [vmem:[%s1 + $0x68] sm:$0xff]
    %v197 = vld [vmem:[%s1 + $0x70] sm:$0xff]
    %v198 = vld [vmem:[%s1 + $0x78] sm:$0xff]
    %199 = vmatprep.subr.mxu0 0.0
    %v200 = vand.u32 %v183, 4294901760
    %201 = vmatpush1.msra.mxu0 %v200
    %202 = vmatprep.subr.mxu0 0.0
    %v203 = vand.u32 %v184, 4294901760
    %204 = vmatpush1.msra.mxu0 %v203
    %205 = vmatprep.subr.mxu0 0.0
    %v206 = vand.u32 %v185, 4294901760
    %207 = vmatpush1.msra.mxu0 %v206
    %208 = vmatprep.subr.mxu0 0.0
    %v209 = vand.u32 %v186, 4294901760
    %210 = vmatpush1.msra.mxu0 %v209
    %211 = vmatprep.subr.mxu0 0.0
    %v212 = vand.u32 %v187, 4294901760
    %213 = vmatpush1.msra.mxu0 %v212
    %214 = vmatprep.subr.mxu0 0.0
    %v215 = vand.u32 %v188, 4294901760
    %216 = vmatpush1.msra.mxu0 %v215
    %217 = vmatprep.subr.mxu0 0.0
    %v218 = vand.u32 %v189, 4294901760
    %219 = vmatpush1.msra.mxu0 %v218
    %220 = vmatprep.subr.mxu0 0.0
    %v221 = vand.u32 %v190, 4294901760
    %222 = vmatpush1.msra.mxu0 %v221
    %223 = vmatprep.subr.mxu0 0.0
    %v224 = vand.u32 %v191, 4294901760
    %225 = vmatpush1.msra.mxu0 %v224
    %226 = vmatprep.subr.mxu0 0.0
    %v227 = vand.u32 %v192, 4294901760
    %228 = vmatpush1.msra.mxu0 %v227
    %229 = vmatprep.subr.mxu0 0.0
    %v230 = vand.u32 %v193, 4294901760
    %231 = vmatpush1.msra.mxu0 %v230
    %232 = vmatprep.subr.mxu0 0.0
    %v233 = vand.u32 %v194, 4294901760
    %234 = vmatpush1.msra.mxu0 %v233
    %235 = vmatprep.subr.mxu0 0.0
    %v236 = vand.u32 %v195, 4294901760
    %237 = vmatpush1.msra.mxu0 %v236
    %238 = vmatprep.subr.mxu0 0.0
    %v239 = vand.u32 %v196, 4294901760
    %240 = vmatpush1.msra.mxu0 %v239
    %241 = vmatprep.subr.mxu0 0.0
    %v242 = vand.u32 %v197, 4294901760
    %243 = vmatpush1.msra.mxu0 %v242
    %244 = vmatprep.subr.mxu0 0.0
    %v245 = vand.u32 %v198, 4294901760
    %246 = vmatpush1.msra.mxu0 %v245
    %247 = vmatprep.subr.mxu0 0.0
    %248 = vmatpush1.msra.mxu0 0.0
    %249 = vmatprep.subr.mxu0 0.0
    %250 = vmatpush1.msra.mxu0 0.0
    %251 = vmatprep.subr.mxu0 0.0
    %252 = vmatpush1.msra.mxu0 0.0
    %253 = vmatprep.subr.mxu0 0.0
    %254 = vmatpush1.msra.mxu0 0.0
    %255 = vmatprep.subr.mxu0 0.0
    %256 = vmatpush1.msra.mxu0 0.0
    %257 = vmatprep.subr.mxu0 0.0
    %258 = vmatpush1.msra.mxu0 0.0
    %259 = vmatprep.subr.mxu0 0.0
    %260 = vmatpush1.msra.mxu0 0.0
    %261 = vmatprep.subr.mxu0 0.0
    %262 = vmatpush1.msra.mxu0 0.0
    %263 = vmatprep.subr.mxu0 0.0
    %264 = vmatpush1.msra.mxu0 0.0
    %265 = vmatprep.subr.mxu0 0.0
    %266 = vmatpush1.msra.mxu0 0.0
    %267 = vmatprep.subr.mxu0 0.0
    %268 = vmatpush1.msra.mxu0 0.0
    %269 = vmatprep.subr.mxu0 0.0
    %270 = vmatpush1.msra.mxu0 0.0
    %271 = vmatprep.subr.mxu0 0.0
    %272 = vmatpush1.msra.mxu0 0.0
    %273 = vmatprep.subr.mxu0 0.0
    %274 = vmatpush1.msra.mxu0 0.0
    %275 = vmatprep.subr.mxu0 0.0
    %276 = vmatpush1.msra.mxu0 0.0
    %277 = vmatprep.subr.mxu0 0.0
    %278 = vmatpush1.msra.mxu0 0.0
    %279 = vmatprep.mubr.f32.mxu0 0.0
    %v280 = vand.u32 %v167, 4294901760
    %v281 = vsub.f32 %v167, %v280
    %v282 = vand.u32 %v281, 4294901760
    %v283 = vsub.f32 %v281, %v282
    %v284 = vand.u32 %v283, 4294901760
    %285 = vmatmul.mubr.f32.gmra.mrb[0].mxu0 %v284
    %v286 = vpop.f32.mrb[0].mxu0
    %v287 = vadd.f32 0.0, %v286
    %v288 = vpop.f32.mrb[0].mxu0
    %289 = vmatprep.mubr.f32.mxu0 0.0
    %v290 = vand.u32 %v168, 4294901760
    %v291 = vsub.f32 %v168, %v290
    %v292 = vand.u32 %v291, 4294901760
    %v293 = vsub.f32 %v291, %v292
    %v294 = vand.u32 %v293, 4294901760
    %295 = vmatmul.mubr.f32.gmra.mrb[0].mxu0 %v294
    %v296 = vpop.f32.mrb[0].mxu0
    %v297 = vadd.f32 0.0, %v296
    %v298 = vpop.f32.mrb[0].mxu0
    %299 = vmatprep.mubr.f32.mxu0 0.0
    %v300 = vand.u32 %v169, 4294901760
    %v301 = vsub.f32 %v169, %v300
    %v302 = vand.u32 %v301, 4294901760
    %v303 = vsub.f32 %v301, %v302
    %v304 = vand.u32 %v303, 4294901760
    %305 = vmatmul.mubr.f32.gmra.mrb[0].mxu0 %v304
    %v306 = vpop.f32.mrb[0].mxu0
    %v307 = vadd.f32 0.0, %v306
    %v308 = vpop.f32.mrb[0].mxu0
    %309 = vmatprep.mubr.f32.mxu0 0.0
    %v310 = vand.u32 %v170, 4294901760
    %v311 = vsub.f32 %v170, %v310
    %v312 = vand.u32 %v311, 4294901760
    %v313 = vsub.f32 %v311, %v312
    %v314 = vand.u32 %v313, 4294901760
    %315 = vmatmul.mubr.f32.gmra.mrb[0].mxu0 %v314
    %v316 = vpop.f32.mrb[0].mxu0
    %v317 = vadd.f32 0.0, %v316
    %v318 = vpop.f32.mrb[0].mxu0
    %319 = vmatprep.mubr.f32.mxu0 0.0
    %v320 = vand.u32 %v171, 4294901760
    %v321 = vsub.f32 %v171, %v320
    %v322 = vand.u32 %v321, 4294901760
    %v323 = vsub.f32 %v321, %v322
    %v324 = vand.u32 %v323, 4294901760
    %325 = vmatmul.mubr.f32.gmra.mrb[0].mxu0 %v324
    %v326 = vpop.f32.mrb[0].mxu0
    %v327 = vadd.f32 0.0, %v326
    %v328 = vpop.f32.mrb[0].mxu0
    %329 = vmatprep.mubr.f32.mxu0 0.0
    %v330 = vand.u32 %v172, 4294901760
    %v331 = vsub.f32 %v172, %v330
    %v332 = vand.u32 %v331, 4294901760
    %v333 = vsub.f32 %v331, %v332
    %v334 = vand.u32 %v333, 4294901760
    %335 = vmatmul.mubr.f32.gmra.mrb[0].mxu0 %v334
    %v336 = vpop.f32.mrb[0].mxu0
    %v337 = vadd.f32 0.0, %v336
    %v338 = vpop.f32.mrb[0].mxu0
    %339 = vmatprep.mubr.f32.mxu0 0.0
    %v340 = vand.u32 %v173, 4294901760
    %v341 = vsub.f32 %v173, %v340
    %v342 = vand.u32 %v341, 4294901760
    %v343 = vsub.f32 %v341, %v342
    %v344 = vand.u32 %v343, 4294901760
    %345 = vmatmul.mubr.f32.gmra.mrb[0].mxu0 %v344
    %v346 = vpop.f32.mrb[0].mxu0
    %v347 = vadd.f32 0.0, %v346
    %v348 = vpop.f32.mrb[0].mxu0
    %349 = vmatprep.mubr.f32.mxu0 0.0
    %v350 = vand.u32 %v174, 4294901760
    %v351 = vsub.f32 %v174, %v350
    %v352 = vand.u32 %v351, 4294901760
    %v353 = vsub.f32 %v351, %v352
    %v354 = vand.u32 %v353, 4294901760
    %355 = vmatmul.mubr.f32.gmra.mrb[0].mxu0 %v354
    %v356 = vpop.f32.mrb[0].mxu0
    %v357 = vadd.f32 0.0, %v356
    %v358 = vpop.f32.mrb[0].mxu0
    %359 = vmatprep.mubr.f32.mxu0 0.0
    %v360 = vand.u32 %v175, 4294901760
    %v361 = vsub.f32 %v175, %v360
    %v362 = vand.u32 %v361, 4294901760
    %v363 = vsub.f32 %v361, %v362
    %v364 = vand.u32 %v363, 4294901760
    %365 = vmatmul.mubr.f32.gmra.mrb[0].mxu0 %v364
    %v366 = vpop.f32.mrb[0].mxu0
    %v367 = vadd.f32 0.0, %v366
    %v368 = vpop.f32.mrb[0].mxu0
    %369 = vmatprep.mubr.f32.mxu0 0.0
    %v370 = vand.u32 %v176, 4294901760
    %v371 = vsub.f32 %v176, %v370
    %v372 = vand.u32 %v371, 4294901760
    %v373 = vsub.f32 %v371, %v372
    %v374 = vand.u32 %v373, 4294901760
    %375 = vmatmul.mubr.f32.gmra.mrb[0].mxu0 %v374
    %v376 = vpop.f32.mrb[0].mxu0
    %v377 = vadd.f32 0.0, %v376
    %v378 = vpop.f32.mrb[0].mxu0
    %379 = vmatprep.mubr.f32.mxu0 0.0
    %v380 = vand.u32 %v177, 4294901760
    %v381 = vsub.f32 %v177, %v380
    %v382 = vand.u32 %v381, 4294901760
    %v383 = vsub.f32 %v381, %v382
    %v384 = vand.u32 %v383, 4294901760
    %385 = vmatmul.mubr.f32.gmra.mrb[0].mxu0 %v384
    %v386 = vpop.f32.mrb[0].mxu0
    %v387 = vadd.f32 0.0, %v386
    %v388 = vpop.f32.mrb[0].mxu0
    %389 = vmatprep.mubr.f32.mxu0 0.0
    %v390 = vand.u32 %v178, 4294901760
    %v391 = vsub.f32 %v178, %v390
    %v392 = vand.u32 %v391, 4294901760
    %v393 = vsub.f32 %v391, %v392
    %v394 = vand.u32 %v393, 4294901760
    %395 = vmatmul.mubr.f32.gmra.mrb[0].mxu0 %v394
    %v396 = vpop.f32.mrb[0].mxu0
    %v397 = vadd.f32 0.0, %v396
    %v398 = vpop.f32.mrb[0].mxu0
    %399 = vmatprep.mubr.f32.mxu0 0.0
    %v400 = vand.u32 %v179, 4294901760
    %v401 = vsub.f32 %v179, %v400
    %v402 = vand.u32 %v401, 4294901760
    %v403 = vsub.f32 %v401, %v402
    %v404 = vand.u32 %v403, 4294901760
    %405 = vmatmul.mubr.f32.gmra.mrb[0].mxu0 %v404
    %v406 = vpop.f32.mrb[0].mxu0
    %v407 = vadd.f32 0.0, %v406
    %v408 = vpop.f32.mrb[0].mxu0
    %409 = vmatprep.mubr.f32.mxu0 0.0
    %v410 = vand.u32 %v180, 4294901760
    %v411 = vsub.f32 %v180, %v410
    %v412 = vand.u32 %v411, 4294901760
    %v413 = vsub.f32 %v411, %v412
    %v414 = vand.u32 %v413, 4294901760
    %415 = vmatmul.mubr.f32.gmra.mrb[0].mxu0 %v414
    %v416 = vpop.f32.mrb[0].mxu0
    %v417 = vadd.f32 0.0, %v416
    %v418 = vpop.f32.mrb[0].mxu0
    %419 = vmatprep.mubr.f32.mxu0 0.0
    %v420 = vand.u32 %v181, 4294901760
    %v421 = vsub.f32 %v181, %v420
    %v422 = vand.u32 %v421, 4294901760
    %v423 = vsub.f32 %v421, %v422
    %v424 = vand.u32 %v423, 4294901760
    %425 = vmatmul.mubr.f32.gmra.mrb[0].mxu0 %v424
    %v426 = vpop.f32.mrb[0].mxu0
    %v427 = vadd.f32 0.0, %v426
    %v428 = vpop.f32.mrb[0].mxu0
    %429 = vmatprep.mubr.f32.mxu0 0.0
    %v430 = vand.u32 %v182, 4294901760
    %v431 = vsub.f32 %v182, %v430
    %v432 = vand.u32 %v431, 4294901760
    %v433 = vsub.f32 %v431, %v432
    %v434 = vand.u32 %v433, 4294901760
    %435 = vmatmul.mubr.f32.gmra.mrb[0].mxu0 %v434
    %v436 = vpop.f32.mrb[0].mxu0
    %v437 = vadd.f32 0.0, %v436
    %v438 = vpop.f32.mrb[0].mxu0
    %439 = vdwg.mxu0
    %440 = vmatprep.subr.mxu0 0.0
    %v441 = vand.u32 %v183, 4294901760
    %v442 = vsub.f32 %v183, %v441
    %v443 = vand.u32 %v442, 4294901760
    %v444 = vsub.f32 %v442, %v443
    %v445 = vand.u32 %v444, 4294901760
    %446 = vmatpush1.msra.mxu0 %v445
    %447 = vmatprep.subr.mxu0 0.0
    %v448 = vand.u32 %v184, 4294901760
    %v449 = vsub.f32 %v184, %v448
    %v450 = vand.u32 %v449, 4294901760
    %v451 = vsub.f32 %v449, %v450
    %v452 = vand.u32 %v451, 4294901760
    %453 = vmatpush1.msra.mxu0 %v452
    %454 = vmatprep.subr.mxu0 0.0
    %v455 = vand.u32 %v185, 4294901760
    %v456 = vsub.f32 %v185, %v455
    %v457 = vand.u32 %v456, 4294901760
    %v458 = vsub.f32 %v456, %v457
    %v459 = vand.u32 %v458, 4294901760
    %460 = vmatpush1.msra.mxu0 %v459
    %461 = vmatprep.subr.mxu0 0.0
    %v462 = vand.u32 %v186, 4294901760
    %v463 = vsub.f32 %v186, %v462
    %v464 = vand.u32 %v463, 4294901760
    %v465 = vsub.f32 %v463, %v464
    %v466 = vand.u32 %v465, 4294901760
    %467 = vmatpush1.msra.mxu0 %v466
    %468 = vmatprep.subr.mxu0 0.0
    %v469 = vand.u32 %v187, 4294901760
    %v470 = vsub.f32 %v187, %v469
    %v471 = vand.u32 %v470, 4294901760
    %v472 = vsub.f32 %v470, %v471
    %v473 = vand.u32 %v472, 4294901760
    %474 = vmatpush1.msra.mxu0 %v473
    %475 = vmatprep.subr.mxu0 0.0
    %v476 = vand.u32 %v188, 4294901760
    %v477 = vsub.f32 %v188, %v476
    %v478 = vand.u32 %v477, 4294901760
    %v479 = vsub.f32 %v477, %v478
    %v480 = vand.u32 %v479, 4294901760
    %481 = vmatpush1.msra.mxu0 %v480
    %482 = vmatprep.subr.mxu0 0.0
    %v483 = vand.u32 %v189, 4294901760
    %v484 = vsub.f32 %v189, %v483
    %v485 = vand.u32 %v484, 4294901760
    %v486 = vsub.f32 %v484, %v485
    %v487 = vand.u32 %v486, 4294901760
    %488 = vmatpush1.msra.mxu0 %v487
    %489 = vmatprep.subr.mxu0 0.0
    %v490 = vand.u32 %v190, 4294901760
    %v491 = vsub.f32 %v190, %v490
    %v492 = vand.u32 %v491, 4294901760
    %v493 = vsub.f32 %v491, %v492
    %v494 = vand.u32 %v493, 4294901760
    %495 = vmatpush1.msra.mxu0 %v494
    %496 = vmatprep.subr.mxu0 0.0
    %v497 = vand.u32 %v191, 4294901760
    %v498 = vsub.f32 %v191, %v497
    %v499 = vand.u32 %v498, 4294901760
    %v500 = vsub.f32 %v498, %v499
    %v501 = vand.u32 %v500, 4294901760
    %502 = vmatpush1.msra.mxu0 %v501
    %503 = vmatprep.subr.mxu0 0.0
    %v504 = vand.u32 %v192, 4294901760
    %v505 = vsub.f32 %v192, %v504
    %v506 = vand.u32 %v505, 4294901760
    %v507 = vsub.f32 %v505, %v506
    %v508 = vand.u32 %v507, 4294901760
    %509 = vmatpush1.msra.mxu0 %v508
    %510 = vmatprep.subr.mxu0 0.0
    %v511 = vand.u32 %v193, 4294901760
    %v512 = vsub.f32 %v193, %v511
    %v513 = vand.u32 %v512, 4294901760
    %v514 = vsub.f32 %v512, %v513
    %v515 = vand.u32 %v514, 4294901760
    %516 = vmatpush1.msra.mxu0 %v515
    %517 = vmatprep.subr.mxu0 0.0
    %v518 = vand.u32 %v194, 4294901760
    %v519 = vsub.f32 %v194, %v518
    %v520 = vand.u32 %v519, 4294901760
    %v521 = vsub.f32 %v519, %v520
    %v522 = vand.u32 %v521, 4294901760
    %523 = vmatpush1.msra.mxu0 %v522
    %524 = vmatprep.subr.mxu0 0.0
    %v525 = vand.u32 %v195, 4294901760
    %v526 = vsub.f32 %v195, %v525
    %v527 = vand.u32 %v526, 4294901760
    %v528 = vsub.f32 %v526, %v527
    %v529 = vand.u32 %v528, 4294901760
    %530 = vmatpush1.msra.mxu0 %v529
    %531 = vmatprep.subr.mxu0 0.0
    %v532 = vand.u32 %v196, 4294901760
    %v533 = vsub.f32 %v196, %v532
    %v534 = vand.u32 %v533, 4294901760
    %v535 = vsub.f32 %v533, %v534
    %v536 = vand.u32 %v535, 4294901760
    %537 = vmatpush1.msra.mxu0 %v536
    %538 = vmatprep.subr.mxu0 0.0
    %v539 = vand.u32 %v197, 4294901760
    %v540 = vsub.f32 %v197, %v539
    %v541 = vand.u32 %v540, 4294901760
    %v542 = vsub.f32 %v540, %v541
    %v543 = vand.u32 %v542, 4294901760
    %544 = vmatpush1.msra.mxu0 %v543
    %545 = vmatprep.subr.mxu0 0.0
    %v546 = vand.u32 %v198, 4294901760
    %v547 = vsub.f32 %v198, %v546
    %v548 = vand.u32 %v547, 4294901760
    %v549 = vsub.f32 %v547, %v548
    %v550 = vand.u32 %v549, 4294901760
    %551 = vmatpush1.msra.mxu0 %v550
    %552 = vmatprep.subr.mxu0 0.0
    %553 = vmatpush1.msra.mxu0 0.0
    %554 = vmatprep.subr.mxu0 0.0
    %555 = vmatpush1.msra.mxu0 0.0
    %556 = vmatprep.subr.mxu0 0.0
    %557 = vmatpush1.msra.mxu0 0.0
    %558 = vmatprep.subr.mxu0 0.0
    %559 = vmatpush1.msra.mxu0 0.0
    %560 = vmatprep.subr.mxu0 0.0
    %561 = vmatpush1.msra.mxu0 0.0
    %562 = vmatprep.subr.mxu0 0.0
    %563 = vmatpush1.msra.mxu0 0.0
    %564 = vmatprep.subr.mxu0 0.0
    %565 = vmatpush1.msra.mxu0 0.0
    %566 = vmatprep.subr.mxu0 0.0
    %567 = vmatpush1.msra.mxu0 0.0
    %568 = vmatprep.subr.mxu0 0.0
    %569 = vmatpush1.msra.mxu0 0.0
    %570 = vmatprep.subr.mxu0 0.0
    %571 = vmatpush1.msra.mxu0 0.0
    %572 = vmatprep.subr.mxu0 0.0
    %573 = vmatpush1.msra.mxu0 0.0
    %574 = vmatprep.subr.mxu0 0.0
    %575 = vmatpush1.msra.mxu0 0.0
    %576 = vmatprep.subr.mxu0 0.0
    %577 = vmatpush1.msra.mxu0 0.0
    %578 = vmatprep.subr.mxu0 0.0
    %579 = vmatpush1.msra.mxu0 0.0
    %580 = vmatprep.subr.mxu0 0.0
    %581 = vmatpush1.msra.mxu0 0.0
    %582 = vmatprep.subr.mxu0 0.0
    %583 = vmatpush1.msra.mxu0 0.0
    %584 = vmatprep.mubr.f32.mxu0 0.0
    %v585 = vand.u32 %v167, 4294901760
    %586 = vmatmul.mubr.f32.gmra.mrb[0].mxu0 %v585
    %v587 = vpop.f32.mrb[0].mxu0
    %v588 = vadd.f32 %v287, %v587
    %v589 = vpop.f32.mrb[0].mxu0
    %590 = vmatprep.mubr.f32.mxu0 0.0
    %v591 = vand.u32 %v168, 4294901760
    %592 = vmatmul.mubr.f32.gmra.mrb[0].mxu0 %v591
    %v593 = vpop.f32.mrb[0].mxu0
    %v594 = vadd.f32 %v297, %v593
    %v595 = vpop.f32.mrb[0].mxu0
    %596 = vmatprep.mubr.f32.mxu0 0.0
    %v597 = vand.u32 %v169, 4294901760
    %598 = vmatmul.mubr.f32.gmra.mrb[0].mxu0 %v597
    %v599 = vpop.f32.mrb[0].mxu0
    %v600 = vadd.f32 %v307, %v599
    %v601 = vpop.f32.mrb[0].mxu0
    %602 = vmatprep.mubr.f32.mxu0 0.0
    %v603 = vand.u32 %v170, 4294901760
    %604 = vmatmul.mubr.f32.gmra.mrb[0].mxu0 %v603
    %v605 = vpop.f32.mrb[0].mxu0
    %v606 = vadd.f32 %v317, %v605
    %v607 = vpop.f32.mrb[0].mxu0
    %608 = vmatprep.mubr.f32.mxu0 0.0
    %v609 = vand.u32 %v171, 4294901760
    %610 = vmatmul.mubr.f32.gmra.mrb[0].mxu0 %v609
    %v611 = vpop.f32.mrb[0].mxu0
    %v612 = vadd.f32 %v327, %v611
    %v613 = vpop.f32.mrb[0].mxu0
    %614 = vmatprep.mubr.f32.mxu0 0.0
    %v615 = vand.u32 %v172, 4294901760
    %616 = vmatmul.mubr.f32.gmra.mrb[0].mxu0 %v615
    %v617 = vpop.f32.mrb[0].mxu0
    %v618 = vadd.f32 %v337, %v617
    %v619 = vpop.f32.mrb[0].mxu0
    %620 = vmatprep.mubr.f32.mxu0 0.0
    %v621 = vand.u32 %v173, 4294901760
    %622 = vmatmul.mubr.f32.gmra.mrb[0].mxu0 %v621
    %v623 = vpop.f32.mrb[0].mxu0
    %v624 = vadd.f32 %v347, %v623
    %v625 = vpop.f32.mrb[0].mxu0
    %626 = vmatprep.mubr.f32.mxu0 0.0
    %v627 = vand.u32 %v174, 4294901760
    %628 = vmatmul.mubr.f32.gmra.mrb[0].mxu0 %v627
    %v629 = vpop.f32.mrb[0].mxu0
    %v630 = vadd.f32 %v357, %v629
    %v631 = vpop.f32.mrb[0].mxu0
    %632 = vmatprep.mubr.f32.mxu0 0.0
    %v633 = vand.u32 %v175, 4294901760
    %634 = vmatmul.mubr.f32.gmra.mrb[0].mxu0 %v633
    %v635 = vpop.f32.mrb[0].mxu0
    %v636 = vadd.f32 %v367, %v635
    %v637 = vpop.f32.mrb[0].mxu0
    %638 = vmatprep.mubr.f32.mxu0 0.0
    %v639 = vand.u32 %v176, 4294901760
    %640 = vmatmul.mubr.f32.gmra.mrb[0].mxu0 %v639
    %v641 = vpop.f32.mrb[0].mxu0
    %v642 = vadd.f32 %v377, %v641
    %v643 = vpop.f32.mrb[0].mxu0
    %644 = vmatprep.mubr.f32.mxu0 0.0
    %v645 = vand.u32 %v177, 4294901760
    %646 = vmatmul.mubr.f32.gmra.mrb[0].mxu0 %v645
    %v647 = vpop.f32.mrb[0].mxu0
    %v648 = vadd.f32 %v387, %v647
    %v649 = vpop.f32.mrb[0].mxu0
    %650 = vmatprep.mubr.f32.mxu0 0.0
    %v651 = vand.u32 %v178, 4294901760
    %652 = vmatmul.mubr.f32.gmra.mrb[0].mxu0 %v651
    %v653 = vpop.f32.mrb[0].mxu0
    %v654 = vadd.f32 %v397, %v653
    %v655 = vpop.f32.mrb[0].mxu0
    %656 = vmatprep.mubr.f32.mxu0 0.0
    %v657 = vand.u32 %v179, 4294901760
    %658 = vmatmul.mubr.f32.gmra.mrb[0].mxu0 %v657
    %v659 = vpop.f32.mrb[0].mxu0
    %v660 = vadd.f32 %v407, %v659
    %v661 = vpop.f32.mrb[0].mxu0
    %662 = vmatprep.mubr.f32.mxu0 0.0
    %v663 = vand.u32 %v180, 4294901760
    %664 = vmatmul.mubr.f32.gmra.mrb[0].mxu0 %v663
    %v665 = vpop.f32.mrb[0].mxu0
    %v666 = vadd.f32 %v417, %v665
    %v667 = vpop.f32.mrb[0].mxu0
    %668 = vmatprep.mubr.f32.mxu0 0.0
    %v669 = vand.u32 %v181, 4294901760
    %670 = vmatmul.mubr.f32.gmra.mrb[0].mxu0 %v669
    %v671 = vpop.f32.mrb[0].mxu0
    %v672 = vadd.f32 %v427, %v671
    %v673 = vpop.f32.mrb[0].mxu0
    %674 = vmatprep.mubr.f32.mxu0 0.0
    %v675 = vand.u32 %v182, 4294901760
    %676 = vmatmul.mubr.f32.gmra.mrb[0].mxu0 %v675
    %v677 = vpop.f32.mrb[0].mxu0
    %v678 = vadd.f32 %v437, %v677
    %v679 = vpop.f32.mrb[0].mxu0
    %680 = vdwg.mxu0
    %681 = vmatprep.subr.mxu0 0.0
    %v682 = vand.u32 %v183, 4294901760
    %v683 = vsub.f32 %v183, %v682
    %684 = vmatpush1.msra.mxu0 %v683
    %685 = vmatprep.subr.mxu0 0.0
    %v686 = vand.u32 %v184, 4294901760
    %v687 = vsub.f32 %v184, %v686
    %688 = vmatpush1.msra.mxu0 %v687
    %689 = vmatprep.subr.mxu0 0.0
    %v690 = vand.u32 %v185, 4294901760
    %v691 = vsub.f32 %v185, %v690
    %692 = vmatpush1.msra.mxu0 %v691
    %693 = vmatprep.subr.mxu0 0.0
    %v694 = vand.u32 %v186, 4294901760
    %v695 = vsub.f32 %v186, %v694
    %696 = vmatpush1.msra.mxu0 %v695
    %697 = vmatprep.subr.mxu0 0.0
    %v698 = vand.u32 %v187, 4294901760
    %v699 = vsub.f32 %v187, %v698
    %700 = vmatpush1.msra.mxu0 %v699
    %701 = vmatprep.subr.mxu0 0.0
    %v702 = vand.u32 %v188, 4294901760
    %v703 = vsub.f32 %v188, %v702
    %704 = vmatpush1.msra.mxu0 %v703
    %705 = vmatprep.subr.mxu0 0.0
    %v706 = vand.u32 %v189, 4294901760
    %v707 = vsub.f32 %v189, %v706
    %708 = vmatpush1.msra.mxu0 %v707
    %709 = vmatprep.subr.mxu0 0.0
    %v710 = vand.u32 %v190, 4294901760
    %v711 = vsub.f32 %v190, %v710
    %712 = vmatpush1.msra.mxu0 %v711
    %713 = vmatprep.subr.mxu0 0.0
    %v714 = vand.u32 %v191, 4294901760
    %v715 = vsub.f32 %v191, %v714
    %716 = vmatpush1.msra.mxu0 %v715
    %717 = vmatprep.subr.mxu0 0.0
    %v718 = vand.u32 %v192, 4294901760
    %v719 = vsub.f32 %v192, %v718
    %720 = vmatpush1.msra.mxu0 %v719
    %721 = vmatprep.subr.mxu0 0.0
    %v722 = vand.u32 %v193, 4294901760
    %v723 = vsub.f32 %v193, %v722
    %724 = vmatpush1.msra.mxu0 %v723
    %725 = vmatprep.subr.mxu0 0.0
    %v726 = vand.u32 %v194, 4294901760
    %v727 = vsub.f32 %v194, %v726
    %728 = vmatpush1.msra.mxu0 %v727
    %729 = vmatprep.subr.mxu0 0.0
    %v730 = vand.u32 %v195, 4294901760
    %v731 = vsub.f32 %v195, %v730
    %732 = vmatpush1.msra.mxu0 %v731
    %733 = vmatprep.subr.mxu0 0.0
    %v734 = vand.u32 %v196, 4294901760
    %v735 = vsub.f32 %v196, %v734
    %736 = vmatpush1.msra.mxu0 %v735
    %737 = vmatprep.subr.mxu0 0.0
    %v738 = vand.u32 %v197, 4294901760
    %v739 = vsub.f32 %v197, %v738
    %740 = vmatpush1.msra.mxu0 %v739
    %741 = vmatprep.subr.mxu0 0.0
    %v742 = vand.u32 %v198, 4294901760
    %v743 = vsub.f32 %v198, %v742
    %744 = vmatpush1.msra.mxu0 %v743
    %745 = vmatprep.subr.mxu0 0.0
    %746 = vmatpush1.msra.mxu0 0.0
    %747 = vmatprep.subr.mxu0 0.0
    %748 = vmatpush1.msra.mxu0 0.0
    %749 = vmatprep.subr.mxu0 0.0
    %750 = vmatpush1.msra.mxu0 0.0
    %751 = vmatprep.subr.mxu0 0.0
    %752 = vmatpush1.msra.mxu0 0.0
    %753 = vmatprep.subr.mxu0 0.0
    %754 = vmatpush1.msra.mxu0 0.0
    %755 = vmatprep.subr.mxu0 0.0
    %756 = vmatpush1.msra.mxu0 0.0
    %757 = vmatprep.subr.mxu0 0.0
    %758 = vmatpush1.msra.mxu0 0.0
    %759 = vmatprep.subr.mxu0 0.0
    %760 = vmatpush1.msra.mxu0 0.0
    %761 = vmatprep.subr.mxu0 0.0
    %762 = vmatpush1.msra.mxu0 0.0
    %763 = vmatprep.subr.mxu0 0.0
    %764 = vmatpush1.msra.mxu0 0.0
    %765 = vmatprep.subr.mxu0 0.0
    %766 = vmatpush1.msra.mxu0 0.0
    %767 = vmatprep.subr.mxu0 0.0
    %768 = vmatpush1.msra.mxu0 0.0
    %769 = vmatprep.subr.mxu0 0.0
    %770 = vmatpush1.msra.mxu0 0.0
    %771 = vmatprep.subr.mxu0 0.0
    %772 = vmatpush1.msra.mxu0 0.0
    %773 = vmatprep.subr.mxu0 0.0
    %774 = vmatpush1.msra.mxu0 0.0
    %775 = vmatprep.subr.mxu0 0.0
    %776 = vmatpush1.msra.mxu0 0.0
    %777 = vmatprep.mubr.f32.mxu0 0.0
    %v778 = vand.u32 %v167, 4294901760
    %v779 = vsub.f32 %v167, %v778
    %780 = vmatmul.mubr.f32.gmra.mrb[0].mxu0 %v779
    %v781 = vpop.f32.mrb[0].mxu0
    %v782 = vadd.f32 %v588, %v781
    %v783 = vpop.f32.mrb[0].mxu0
    %784 = vmatprep.mubr.f32.mxu0 0.0
    %v785 = vand.u32 %v168, 4294901760
    %v786 = vsub.f32 %v168, %v785
    %787 = vmatmul.mubr.f32.gmra.mrb[0].mxu0 %v786
    %v788 = vpop.f32.mrb[0].mxu0
    %v789 = vadd.f32 %v594, %v788
    %v790 = vpop.f32.mrb[0].mxu0
    %791 = vmatprep.mubr.f32.mxu0 0.0
    %v792 = vand.u32 %v169, 4294901760
    %v793 = vsub.f32 %v169, %v792
    %794 = vmatmul.mubr.f32.gmra.mrb[0].mxu0 %v793
    %v795 = vpop.f32.mrb[0].mxu0
    %v796 = vadd.f32 %v600, %v795
    %v797 = vpop.f32.mrb[0].mxu0
    %798 = vmatprep.mubr.f32.mxu0 0.0
    %v799 = vand.u32 %v170, 4294901760
    %v800 = vsub.f32 %v170, %v799
    %801 = vmatmul.mubr.f32.gmra.mrb[0].mxu0 %v800
    %v802 = vpop.f32.mrb[0].mxu0
    %v803 = vadd.f32 %v606, %v802
    %v804 = vpop.f32.mrb[0].mxu0
    %805 = vmatprep.mubr.f32.mxu0 0.0
    %v806 = vand.u32 %v171, 4294901760
    %v807 = vsub.f32 %v171, %v806
    %808 = vmatmul.mubr.f32.gmra.mrb[0].mxu0 %v807
    %v809 = vpop.f32.mrb[0].mxu0
    %v810 = vadd.f32 %v612, %v809
    %v811 = vpop.f32.mrb[0].mxu0
    %812 = vmatprep.mubr.f32.mxu0 0.0
    %v813 = vand.u32 %v172, 4294901760
    %v814 = vsub.f32 %v172, %v813
    %815 = vmatmul.mubr.f32.gmra.mrb[0].mxu0 %v814
    %v816 = vpop.f32.mrb[0].mxu0
    %v817 = vadd.f32 %v618, %v816
    %v818 = vpop.f32.mrb[0].mxu0
    %819 = vmatprep.mubr.f32.mxu0 0.0
    %v820 = vand.u32 %v173, 4294901760
    %v821 = vsub.f32 %v173, %v820
    %822 = vmatmul.mubr.f32.gmra.mrb[0].mxu0 %v821
    %v823 = vpop.f32.mrb[0].mxu0
    %v824 = vadd.f32 %v624, %v823
    %v825 = vpop.f32.mrb[0].mxu0
    %826 = vmatprep.mubr.f32.mxu0 0.0
    %v827 = vand.u32 %v174, 4294901760
    %v828 = vsub.f32 %v174, %v827
    %829 = vmatmul.mubr.f32.gmra.mrb[0].mxu0 %v828
    %v830 = vpop.f32.mrb[0].mxu0
    %v831 = vadd.f32 %v630, %v830
    %v832 = vpop.f32.mrb[0].mxu0
    %833 = vmatprep.mubr.f32.mxu0 0.0
    %v834 = vand.u32 %v175, 4294901760
    %v835 = vsub.f32 %v175, %v834
    %836 = vmatmul.mubr.f32.gmra.mrb[0].mxu0 %v835
    %v837 = vpop.f32.mrb[0].mxu0
    %v838 = vadd.f32 %v636, %v837
    %v839 = vpop.f32.mrb[0].mxu0
    %840 = vmatprep.mubr.f32.mxu0 0.0
    %v841 = vand.u32 %v176, 4294901760
    %v842 = vsub.f32 %v176, %v841
    %843 = vmatmul.mubr.f32.gmra.mrb[0].mxu0 %v842
    %v844 = vpop.f32.mrb[0].mxu0
    %v845 = vadd.f32 %v642, %v844
    %v846 = vpop.f32.mrb[0].mxu0
    %847 = vmatprep.mubr.f32.mxu0 0.0
    %v848 = vand.u32 %v177, 4294901760
    %v849 = vsub.f32 %v177, %v848
    %850 = vmatmul.mubr.f32.gmra.mrb[0].mxu0 %v849
    %v851 = vpop.f32.mrb[0].mxu0
    %v852 = vadd.f32 %v648, %v851
    %v853 = vpop.f32.mrb[0].mxu0
    %854 = vmatprep.mubr.f32.mxu0 0.0
    %v855 = vand.u32 %v178, 4294901760
    %v856 = vsub.f32 %v178, %v855
    %857 = vmatmul.mubr.f32.gmra.mrb[0].mxu0 %v856
    %v858 = vpop.f32.mrb[0].mxu0
    %v859 = vadd.f32 %v654, %v858
    %v860 = vpop.f32.mrb[0].mxu0
    %861 = vmatprep.mubr.f32.mxu0 0.0
    %v862 = vand.u32 %v179, 4294901760
    %v863 = vsub.f32 %v179, %v862
    %864 = vmatmul.mubr.f32.gmra.mrb[0].mxu0 %v863
    %v865 = vpop.f32.mrb[0].mxu0
    %v866 = vadd.f32 %v660, %v865
    %v867 = vpop.f32.mrb[0].mxu0
    %868 = vmatprep.mubr.f32.mxu0 0.0
    %v869 = vand.u32 %v180, 4294901760
    %v870 = vsub.f32 %v180, %v869
    %871 = vmatmul.mubr.f32.gmra.mrb[0].mxu0 %v870
    %v872 = vpop.f32.mrb[0].mxu0
    %v873 = vadd.f32 %v666, %v872
    %v874 = vpop.f32.mrb[0].mxu0
    %875 = vmatprep.mubr.f32.mxu0 0.0
    %v876 = vand.u32 %v181, 4294901760
    %v877 = vsub.f32 %v181, %v876
    %878 = vmatmul.mubr.f32.gmra.mrb[0].mxu0 %v877
    %v879 = vpop.f32.mrb[0].mxu0
    %v880 = vadd.f32 %v672, %v879
    %v881 = vpop.f32.mrb[0].mxu0
    %882 = vmatprep.mubr.f32.mxu0 0.0
    %v883 = vand.u32 %v182, 4294901760
    %v884 = vsub.f32 %v182, %v883
    %885 = vmatmul.mubr.f32.gmra.mrb[0].mxu0 %v884
    %v886 = vpop.f32.mrb[0].mxu0
    %v887 = vadd.f32 %v678, %v886
    %v888 = vpop.f32.mrb[0].mxu0
    %889 = vdwg.mxu0
    %890 = vmatprep.subr.mxu0 0.0
    %v891 = vand.u32 %v183, 4294901760
    %892 = vmatpush1.msra.mxu0 %v891
    %893 = vmatprep.subr.mxu0 0.0
    %v894 = vand.u32 %v184, 4294901760
    %895 = vmatpush1.msra.mxu0 %v894
    %896 = vmatprep.subr.mxu0 0.0
    %v897 = vand.u32 %v185, 4294901760
    %898 = vmatpush1.msra.mxu0 %v897
    %899 = vmatprep.subr.mxu0 0.0
    %v900 = vand.u32 %v186, 4294901760
    %901 = vmatpush1.msra.mxu0 %v900
    %902 = vmatprep.subr.mxu0 0.0
    %v903 = vand.u32 %v187, 4294901760
    %904 = vmatpush1.msra.mxu0 %v903
    %905 = vmatprep.subr.mxu0 0.0
    %v906 = vand.u32 %v188, 4294901760
    %907 = vmatpush1.msra.mxu0 %v906
    %908 = vmatprep.subr.mxu0 0.0
    %v909 = vand.u32 %v189, 4294901760
    %910 = vmatpush1.msra.mxu0 %v909
    %911 = vmatprep.subr.mxu0 0.0
    %v912 = vand.u32 %v190, 4294901760
    %913 = vmatpush1.msra.mxu0 %v912
    %914 = vmatprep.subr.mxu0 0.0
    %v915 = vand.u32 %v191, 4294901760
    %916 = vmatpush1.msra.mxu0 %v915
    %917 = vmatprep.subr.mxu0 0.0
    %v918 = vand.u32 %v192, 4294901760
    %919 = vmatpush1.msra.mxu0 %v918
    %920 = vmatprep.subr.mxu0 0.0
    %v921 = vand.u32 %v193, 4294901760
    %922 = vmatpush1.msra.mxu0 %v921
    %923 = vmatprep.subr.mxu0 0.0
    %v924 = vand.u32 %v194, 4294901760
    %925 = vmatpush1.msra.mxu0 %v924
    %926 = vmatprep.subr.mxu0 0.0
    %v927 = vand.u32 %v195, 4294901760
    %928 = vmatpush1.msra.mxu0 %v927
    %929 = vmatprep.subr.mxu0 0.0
    %v930 = vand.u32 %v196, 4294901760
    %931 = vmatpush1.msra.mxu0 %v930
    %932 = vmatprep.subr.mxu0 0.0
    %v933 = vand.u32 %v197, 4294901760
    %934 = vmatpush1.msra.mxu0 %v933
    %935 = vmatprep.subr.mxu0 0.0
    %v936 = vand.u32 %v198, 4294901760
    %937 = vmatpush1.msra.mxu0 %v936
    %938 = vmatprep.subr.mxu0 0.0
    %939 = vmatpush1.msra.mxu0 0.0
    %940 = vmatprep.subr.mxu0 0.0
    %941 = vmatpush1.msra.mxu0 0.0
    %942 = vmatprep.subr.mxu0 0.0
    %943 = vmatpush1.msra.mxu0 0.0
    %944 = vmatprep.subr.mxu0 0.0
    %945 = vmatpush1.msra.mxu0 0.0
    %946 = vmatprep.subr.mxu0 0.0
    %947 = vmatpush1.msra.mxu0 0.0
    %948 = vmatprep.subr.mxu0 0.0
    %949 = vmatpush1.msra.mxu0 0.0
    %950 = vmatprep.subr.mxu0 0.0
    %951 = vmatpush1.msra.mxu0 0.0
    %952 = vmatprep.subr.mxu0 0.0
    %953 = vmatpush1.msra.mxu0 0.0
    %954 = vmatprep.subr.mxu0 0.0
    %955 = vmatpush1.msra.mxu0 0.0
    %956 = vmatprep.subr.mxu0 0.0
    %957 = vmatpush1.msra.mxu0 0.0
    %958 = vmatprep.subr.mxu0 0.0
    %959 = vmatpush1.msra.mxu0 0.0
    %960 = vmatprep.subr.mxu0 0.0
    %961 = vmatpush1.msra.mxu0 0.0
    %962 = vmatprep.subr.mxu0 0.0
    %963 = vmatpush1.msra.mxu0 0.0
    %964 = vmatprep.subr.mxu0 0.0
    %965 = vmatpush1.msra.mxu0 0.0
    %966 = vmatprep.subr.mxu0 0.0
    %967 = vmatpush1.msra.mxu0 0.0
    %968 = vmatprep.subr.mxu0 0.0
    %969 = vmatpush1.msra.mxu0 0.0
    %970 = vmatprep.mubr.f32.mxu0 0.0
    %v971 = vand.u32 %v167, 4294901760
    %v972 = vsub.f32 %v167, %v971
    %v973 = vand.u32 %v972, 4294901760
    %974 = vmatmul.mubr.f32.gmra.mrb[0].mxu0 %v973
    %v975 = vpop.f32.mrb[0].mxu0
    %v976 = vadd.f32 %v782, %v975
    %v977 = vpop.f32.mrb[0].mxu0
    %978 = vmatprep.mubr.f32.mxu0 0.0
    %v979 = vand.u32 %v168, 4294901760
    %v980 = vsub.f32 %v168, %v979
    %v981 = vand.u32 %v980, 4294901760
    %982 = vmatmul.mubr.f32.gmra.mrb[0].mxu0 %v981
    %v983 = vpop.f32.mrb[0].mxu0
    %v984 = vadd.f32 %v789, %v983
    %v985 = vpop.f32.mrb[0].mxu0
    %986 = vmatprep.mubr.f32.mxu0 0.0
    %v987 = vand.u32 %v169, 4294901760
    %v988 = vsub.f32 %v169, %v987
    %v989 = vand.u32 %v988, 4294901760
    %990 = vmatmul.mubr.f32.gmra.mrb[0].mxu0 %v989
    %v991 = vpop.f32.mrb[0].mxu0
    %v992 = vadd.f32 %v796, %v991
    %v993 = vpop.f32.mrb[0].mxu0
    %994 = vmatprep.mubr.f32.mxu0 0.0
    %v995 = vand.u32 %v170, 4294901760
    %v996 = vsub.f32 %v170, %v995
    %v997 = vand.u32 %v996, 4294901760
    %998 = vmatmul.mubr.f32.gmra.mrb[0].mxu0 %v997
    %v999 = vpop.f32.mrb[0].mxu0
    %v1000 = vadd.f32 %v803, %v999
    %v1001 = vpop.f32.mrb[0].mxu0
    %1002 = vmatprep.mubr.f32.mxu0 0.0
    %v1003 = vand.u32 %v171, 4294901760
    %v1004 = vsub.f32 %v171, %v1003
    %v1005 = vand.u32 %v1004, 4294901760
    %1006 = vmatmul.mubr.f32.gmra.mrb[0].mxu0 %v1005
    %v1007 = vpop.f32.mrb[0].mxu0
    %v1008 = vadd.f32 %v810, %v1007
    %v1009 = vpop.f32.mrb[0].mxu0
    %1010 = vmatprep.mubr.f32.mxu0 0.0
    %v1011 = vand.u32 %v172, 4294901760
    %v1012 = vsub.f32 %v172, %v1011
    %v1013 = vand.u32 %v1012, 4294901760
    %1014 = vmatmul.mubr.f32.gmra.mrb[0].mxu0 %v1013
    %v1015 = vpop.f32.mrb[0].mxu0
    %v1016 = vadd.f32 %v817, %v1015
    %v1017 = vpop.f32.mrb[0].mxu0
    %1018 = vmatprep.mubr.f32.mxu0 0.0
    %v1019 = vand.u32 %v173, 4294901760
    %v1020 = vsub.f32 %v173, %v1019
    %v1021 = vand.u32 %v1020, 4294901760
    %1022 = vmatmul.mubr.f32.gmra.mrb[0].mxu0 %v1021
    %v1023 = vpop.f32.mrb[0].mxu0
    %v1024 = vadd.f32 %v824, %v1023
    %v1025 = vpop.f32.mrb[0].mxu0
    %1026 = vmatprep.mubr.f32.mxu0 0.0
    %v1027 = vand.u32 %v174, 4294901760
    %v1028 = vsub.f32 %v174, %v1027
    %v1029 = vand.u32 %v1028, 4294901760
    %1030 = vmatmul.mubr.f32.gmra.mrb[0].mxu0 %v1029
    %v1031 = vpop.f32.mrb[0].mxu0
    %v1032 = vadd.f32 %v831, %v1031
    %v1033 = vpop.f32.mrb[0].mxu0
    %1034 = vmatprep.mubr.f32.mxu0 0.0
    %v1035 = vand.u32 %v175, 4294901760
    %v1036 = vsub.f32 %v175, %v1035
    %v1037 = vand.u32 %v1036, 4294901760
    %1038 = vmatmul.mubr.f32.gmra.mrb[0].mxu0 %v1037
    %v1039 = vpop.f32.mrb[0].mxu0
    %v1040 = vadd.f32 %v838, %v1039
    %v1041 = vpop.f32.mrb[0].mxu0
    %1042 = vmatprep.mubr.f32.mxu0 0.0
    %v1043 = vand.u32 %v176, 4294901760
    %v1044 = vsub.f32 %v176, %v1043
    %v1045 = vand.u32 %v1044, 4294901760
    %1046 = vmatmul.mubr.f32.gmra.mrb[0].mxu0 %v1045
    %v1047 = vpop.f32.mrb[0].mxu0
    %v1048 = vadd.f32 %v845, %v1047
    %v1049 = vpop.f32.mrb[0].mxu0
    %1050 = vmatprep.mubr.f32.mxu0 0.0
    %v1051 = vand.u32 %v177, 4294901760
    %v1052 = vsub.f32 %v177, %v1051
    %v1053 = vand.u32 %v1052, 4294901760
    %1054 = vmatmul.mubr.f32.gmra.mrb[0].mxu0 %v1053
    %v1055 = vpop.f32.mrb[0].mxu0
    %v1056 = vadd.f32 %v852, %v1055
    %v1057 = vpop.f32.mrb[0].mxu0
    %1058 = vmatprep.mubr.f32.mxu0 0.0
    %v1059 = vand.u32 %v178, 4294901760
    %v1060 = vsub.f32 %v178, %v1059
    %v1061 = vand.u32 %v1060, 4294901760
    %1062 = vmatmul.mubr.f32.gmra.mrb[0].mxu0 %v1061
    %v1063 = vpop.f32.mrb[0].mxu0
    %v1064 = vadd.f32 %v859, %v1063
    %v1065 = vpop.f32.mrb[0].mxu0
    %1066 = vmatprep.mubr.f32.mxu0 0.0
    %v1067 = vand.u32 %v179, 4294901760
    %v1068 = vsub.f32 %v179, %v1067
    %v1069 = vand.u32 %v1068, 4294901760
    %1070 = vmatmul.mubr.f32.gmra.mrb[0].mxu0 %v1069
    %v1071 = vpop.f32.mrb[0].mxu0
    %v1072 = vadd.f32 %v866, %v1071
    %v1073 = vpop.f32.mrb[0].mxu0
    %1074 = vmatprep.mubr.f32.mxu0 0.0
    %v1075 = vand.u32 %v180, 4294901760
    %v1076 = vsub.f32 %v180, %v1075
    %v1077 = vand.u32 %v1076, 4294901760
    %1078 = vmatmul.mubr.f32.gmra.mrb[0].mxu0 %v1077
    %v1079 = vpop.f32.mrb[0].mxu0
    %v1080 = vadd.f32 %v873, %v1079
    %v1081 = vpop.f32.mrb[0].mxu0
    %1082 = vmatprep.mubr.f32.mxu0 0.0
    %v1083 = vand.u32 %v181, 4294901760
    %v1084 = vsub.f32 %v181, %v1083
    %v1085 = vand.u32 %v1084, 4294901760
    %1086 = vmatmul.mubr.f32.gmra.mrb[0].mxu0 %v1085
    %v1087 = vpop.f32.mrb[0].mxu0
    %v1088 = vadd.f32 %v880, %v1087
    %v1089 = vpop.f32.mrb[0].mxu0
    %1090 = vmatprep.mubr.f32.mxu0 0.0
    %v1091 = vand.u32 %v182, 4294901760
    %v1092 = vsub.f32 %v182, %v1091
    %v1093 = vand.u32 %v1092, 4294901760
    %1094 = vmatmul.mubr.f32.gmra.mrb[0].mxu0 %v1093
    %v1095 = vpop.f32.mrb[0].mxu0
    %v1096 = vadd.f32 %v887, %v1095
    %v1097 = vpop.f32.mrb[0].mxu0
    %1098 = vdwg.mxu0
    %1099 = vmatprep.subr.mxu0 0.0
    %v1100 = vand.u32 %v183, 4294901760
    %v1101 = vsub.f32 %v183, %v1100
    %v1102 = vand.u32 %v1101, 4294901760
    %1103 = vmatpush1.msra.mxu0 %v1102
    %1104 = vmatprep.subr.mxu0 0.0
    %v1105 = vand.u32 %v184, 4294901760
    %v1106 = vsub.f32 %v184, %v1105
    %v1107 = vand.u32 %v1106, 4294901760
    %1108 = vmatpush1.msra.mxu0 %v1107
    %1109 = vmatprep.subr.mxu0 0.0
    %v1110 = vand.u32 %v185, 4294901760
    %v1111 = vsub.f32 %v185, %v1110
    %v1112 = vand.u32 %v1111, 4294901760
    %1113 = vmatpush1.msra.mxu0 %v1112
    %1114 = vmatprep.subr.mxu0 0.0
    %v1115 = vand.u32 %v186, 4294901760
    %v1116 = vsub.f32 %v186, %v1115
    %v1117 = vand.u32 %v1116, 4294901760
    %1118 = vmatpush1.msra.mxu0 %v1117
    %1119 = vmatprep.subr.mxu0 0.0
    %v1120 = vand.u32 %v187, 4294901760
    %v1121 = vsub.f32 %v187, %v1120
    %v1122 = vand.u32 %v1121, 4294901760
    %1123 = vmatpush1.msra.mxu0 %v1122
    %1124 = vmatprep.subr.mxu0 0.0
    %v1125 = vand.u32 %v188, 4294901760
    %v1126 = vsub.f32 %v188, %v1125
    %v1127 = vand.u32 %v1126, 4294901760
    %1128 = vmatpush1.msra.mxu0 %v1127
    %1129 = vmatprep.subr.mxu0 0.0
    %v1130 = vand.u32 %v189, 4294901760
    %v1131 = vsub.f32 %v189, %v1130
    %v1132 = vand.u32 %v1131, 4294901760
    %1133 = vmatpush1.msra.mxu0 %v1132
    %1134 = vmatprep.subr.mxu0 0.0
    %v1135 = vand.u32 %v190, 4294901760
    %v1136 = vsub.f32 %v190, %v1135
    %v1137 = vand.u32 %v1136, 4294901760
    %1138 = vmatpush1.msra.mxu0 %v1137
    %1139 = vmatprep.subr.mxu0 0.0
    %v1140 = vand.u32 %v191, 4294901760
    %v1141 = vsub.f32 %v191, %v1140
    %v1142 = vand.u32 %v1141, 4294901760
    %1143 = vmatpush1.msra.mxu0 %v1142
    %1144 = vmatprep.subr.mxu0 0.0
    %v1145 = vand.u32 %v192, 4294901760
    %v1146 = vsub.f32 %v192, %v1145
    %v1147 = vand.u32 %v1146, 4294901760
    %1148 = vmatpush1.msra.mxu0 %v1147
    %1149 = vmatprep.subr.mxu0 0.0
    %v1150 = vand.u32 %v193, 4294901760
    %v1151 = vsub.f32 %v193, %v1150
    %v1152 = vand.u32 %v1151, 4294901760
    %1153 = vmatpush1.msra.mxu0 %v1152
    %1154 = vmatprep.subr.mxu0 0.0
    %v1155 = vand.u32 %v194, 4294901760
    %v1156 = vsub.f32 %v194, %v1155
    %v1157 = vand.u32 %v1156, 4294901760
    %1158 = vmatpush1.msra.mxu0 %v1157
    %1159 = vmatprep.subr.mxu0 0.0
    %v1160 = vand.u32 %v195, 4294901760
    %v1161 = vsub.f32 %v195, %v1160
    %v1162 = vand.u32 %v1161, 4294901760
    %1163 = vmatpush1.msra.mxu0 %v1162
    %1164 = vmatprep.subr.mxu0 0.0
    %v1165 = vand.u32 %v196, 4294901760
    %v1166 = vsub.f32 %v196, %v1165
    %v1167 = vand.u32 %v1166, 4294901760
    %1168 = vmatpush1.msra.mxu0 %v1167
    %1169 = vmatprep.subr.mxu0 0.0
    %v1170 = vand.u32 %v197, 4294901760
    %v1171 = vsub.f32 %v197, %v1170
    %v1172 = vand.u32 %v1171, 4294901760
    %1173 = vmatpush1.msra.mxu0 %v1172
    %1174 = vmatprep.subr.mxu0 0.0
    %v1175 = vand.u32 %v198, 4294901760
    %v1176 = vsub.f32 %v198, %v1175
    %v1177 = vand.u32 %v1176, 4294901760
    %1178 = vmatpush1.msra.mxu0 %v1177
    %1179 = vmatprep.subr.mxu0 0.0
    %1180 = vmatpush1.msra.mxu0 0.0
    %1181 = vmatprep.subr.mxu0 0.0
    %1182 = vmatpush1.msra.mxu0 0.0
    %1183 = vmatprep.subr.mxu0 0.0
    %1184 = vmatpush1.msra.mxu0 0.0
    %1185 = vmatprep.subr.mxu0 0.0
    %1186 = vmatpush1.msra.mxu0 0.0
    %1187 = vmatprep.subr.mxu0 0.0
    %1188 = vmatpush1.msra.mxu0 0.0
    %1189 = vmatprep.subr.mxu0 0.0
    %1190 = vmatpush1.msra.mxu0 0.0
    %1191 = vmatprep.subr.mxu0 0.0
    %1192 = vmatpush1.msra.mxu0 0.0
    %1193 = vmatprep.subr.mxu0 0.0
    %1194 = vmatpush1.msra.mxu0 0.0
    %1195 = vmatprep.subr.mxu0 0.0
    %1196 = vmatpush1.msra.mxu0 0.0
    %1197 = vmatprep.subr.mxu0 0.0
    %1198 = vmatpush1.msra.mxu0 0.0
    %1199 = vmatprep.subr.mxu0 0.0
    %1200 = vmatpush1.msra.mxu0 0.0
    %1201 = vmatprep.subr.mxu0 0.0
    %1202 = vmatpush1.msra.mxu0 0.0
    %1203 = vmatprep.subr.mxu0 0.0
    %1204 = vmatpush1.msra.mxu0 0.0
    %1205 = vmatprep.subr.mxu0 0.0
    %1206 = vmatpush1.msra.mxu0 0.0
    %1207 = vmatprep.subr.mxu0 0.0
    %1208 = vmatpush1.msra.mxu0 0.0
    %1209 = vmatprep.subr.mxu0 0.0
    %1210 = vmatpush1.msra.mxu0 0.0
    %1211 = vmatprep.mubr.f32.mxu0 0.0
    %v1212 = vand.u32 %v167, 4294901760
    %1213 = vmatmul.mubr.f32.gmra.mrb[0].mxu0 %v1212
    %v1214 = vpop.f32.mrb[0].mxu0
    %v1215 = vadd.f32 %v976, %v1214
    %v1216 = vpop.f32.mrb[0].mxu0
    %1217 = vmatprep.mubr.f32.mxu0 0.0
    %v1218 = vand.u32 %v168, 4294901760
    %1219 = vmatmul.mubr.f32.gmra.mrb[0].mxu0 %v1218
    %v1220 = vpop.f32.mrb[0].mxu0
    %v1221 = vadd.f32 %v984, %v1220
    %v1222 = vpop.f32.mrb[0].mxu0
    %1223 = vmatprep.mubr.f32.mxu0 0.0
    %v1224 = vand.u32 %v169, 4294901760
    %1225 = vmatmul.mubr.f32.gmra.mrb[0].mxu0 %v1224
    %v1226 = vpop.f32.mrb[0].mxu0
    %v1227 = vadd.f32 %v992, %v1226
    %v1228 = vpop.f32.mrb[0].mxu0
    %1229 = vmatprep.mubr.f32.mxu0 0.0
    %v1230 = vand.u32 %v170, 4294901760
    %1231 = vmatmul.mubr.f32.gmra.mrb[0].mxu0 %v1230
    %v1232 = vpop.f32.mrb[0].mxu0
    %v1233 = vadd.f32 %v1000, %v1232
    %v1234 = vpop.f32.mrb[0].mxu0
    %1235 = vmatprep.mubr.f32.mxu0 0.0
    %v1236 = vand.u32 %v171, 4294901760
    %1237 = vmatmul.mubr.f32.gmra.mrb[0].mxu0 %v1236
    %v1238 = vpop.f32.mrb[0].mxu0
    %v1239 = vadd.f32 %v1008, %v1238
    %v1240 = vpop.f32.mrb[0].mxu0
    %1241 = vmatprep.mubr.f32.mxu0 0.0
    %v1242 = vand.u32 %v172, 4294901760
    %1243 = vmatmul.mubr.f32.gmra.mrb[0].mxu0 %v1242
    %v1244 = vpop.f32.mrb[0].mxu0
    %v1245 = vadd.f32 %v1016, %v1244
    %v1246 = vpop.f32.mrb[0].mxu0
    %1247 = vmatprep.mubr.f32.mxu0 0.0
    %v1248 = vand.u32 %v173, 4294901760
    %1249 = vmatmul.mubr.f32.gmra.mrb[0].mxu0 %v1248
    %v1250 = vpop.f32.mrb[0].mxu0
    %v1251 = vadd.f32 %v1024, %v1250
    %v1252 = vpop.f32.mrb[0].mxu0
    %1253 = vmatprep.mubr.f32.mxu0 0.0
    %v1254 = vand.u32 %v174, 4294901760
    %1255 = vmatmul.mubr.f32.gmra.mrb[0].mxu0 %v1254
    %v1256 = vpop.f32.mrb[0].mxu0
    %v1257 = vadd.f32 %v1032, %v1256
    %v1258 = vpop.f32.mrb[0].mxu0
    %1259 = vmatprep.mubr.f32.mxu0 0.0
    %v1260 = vand.u32 %v175, 4294901760
    %1261 = vmatmul.mubr.f32.gmra.mrb[0].mxu0 %v1260
    %v1262 = vpop.f32.mrb[0].mxu0
    %v1263 = vadd.f32 %v1040, %v1262
    %v1264 = vpop.f32.mrb[0].mxu0
    %1265 = vmatprep.mubr.f32.mxu0 0.0
    %v1266 = vand.u32 %v176, 4294901760
    %1267 = vmatmul.mubr.f32.gmra.mrb[0].mxu0 %v1266
    %v1268 = vpop.f32.mrb[0].mxu0
    %v1269 = vadd.f32 %v1048, %v1268
    %v1270 = vpop.f32.mrb[0].mxu0
    %1271 = vmatprep.mubr.f32.mxu0 0.0
    %v1272 = vand.u32 %v177, 4294901760
    %1273 = vmatmul.mubr.f32.gmra.mrb[0].mxu0 %v1272
    %v1274 = vpop.f32.mrb[0].mxu0
    %v1275 = vadd.f32 %v1056, %v1274
    %v1276 = vpop.f32.mrb[0].mxu0
    %1277 = vmatprep.mubr.f32.mxu0 0.0
    %v1278 = vand.u32 %v178, 4294901760
    %1279 = vmatmul.mubr.f32.gmra.mrb[0].mxu0 %v1278
    %v1280 = vpop.f32.mrb[0].mxu0
    %v1281 = vadd.f32 %v1064, %v1280
    %v1282 = vpop.f32.mrb[0].mxu0
    %1283 = vmatprep.mubr.f32.mxu0 0.0
    %v1284 = vand.u32 %v179, 4294901760
    %1285 = vmatmul.mubr.f32.gmra.mrb[0].mxu0 %v1284
    %v1286 = vpop.f32.mrb[0].mxu0
    %v1287 = vadd.f32 %v1072, %v1286
    %v1288 = vpop.f32.mrb[0].mxu0
    %1289 = vmatprep.mubr.f32.mxu0 0.0
    %v1290 = vand.u32 %v180, 4294901760
    %1291 = vmatmul.mubr.f32.gmra.mrb[0].mxu0 %v1290
    %v1292 = vpop.f32.mrb[0].mxu0
    %v1293 = vadd.f32 %v1080, %v1292
    %v1294 = vpop.f32.mrb[0].mxu0
    %1295 = vmatprep.mubr.f32.mxu0 0.0
    %v1296 = vand.u32 %v181, 4294901760
    %1297 = vmatmul.mubr.f32.gmra.mrb[0].mxu0 %v1296
    %v1298 = vpop.f32.mrb[0].mxu0
    %v1299 = vadd.f32 %v1088, %v1298
    %v1300 = vpop.f32.mrb[0].mxu0
    %1301 = vmatprep.mubr.f32.mxu0 0.0
    %v1302 = vand.u32 %v182, 4294901760
    %1303 = vmatmul.mubr.f32.gmra.mrb[0].mxu0 %v1302
    %v1304 = vpop.f32.mrb[0].mxu0
    %v1305 = vadd.f32 %v1096, %v1304
    %v1306 = vpop.f32.mrb[0].mxu0
    %1307 = vdwg.mxu0
    %1308 = vmatprep.subr.mxu0 0.0
    %v1309 = vand.u32 %v183, 4294901760
    %1310 = vmatpush1.msra.mxu0 %v1309
    %1311 = vmatprep.subr.mxu0 0.0
    %v1312 = vand.u32 %v184, 4294901760
    %1313 = vmatpush1.msra.mxu0 %v1312
    %1314 = vmatprep.subr.mxu0 0.0
    %v1315 = vand.u32 %v185, 4294901760
    %1316 = vmatpush1.msra.mxu0 %v1315
    %1317 = vmatprep.subr.mxu0 0.0
    %v1318 = vand.u32 %v186, 4294901760
    %1319 = vmatpush1.msra.mxu0 %v1318
    %1320 = vmatprep.subr.mxu0 0.0
    %v1321 = vand.u32 %v187, 4294901760
    %1322 = vmatpush1.msra.mxu0 %v1321
    %1323 = vmatprep.subr.mxu0 0.0
    %v1324 = vand.u32 %v188, 4294901760
    %1325 = vmatpush1.msra.mxu0 %v1324
    %1326 = vmatprep.subr.mxu0 0.0
    %v1327 = vand.u32 %v189, 4294901760
    %1328 = vmatpush1.msra.mxu0 %v1327
    %1329 = vmatprep.subr.mxu0 0.0
    %v1330 = vand.u32 %v190, 4294901760
    %1331 = vmatpush1.msra.mxu0 %v1330
    %1332 = vmatprep.subr.mxu0 0.0
    %v1333 = vand.u32 %v191, 4294901760
    %1334 = vmatpush1.msra.mxu0 %v1333
    %1335 = vmatprep.subr.mxu0 0.0
    %v1336 = vand.u32 %v192, 4294901760
    %1337 = vmatpush1.msra.mxu0 %v1336
    %1338 = vmatprep.subr.mxu0 0.0
    %v1339 = vand.u32 %v193, 4294901760
    %1340 = vmatpush1.msra.mxu0 %v1339
    %1341 = vmatprep.subr.mxu0 0.0
    %v1342 = vand.u32 %v194, 4294901760
    %1343 = vmatpush1.msra.mxu0 %v1342
    %1344 = vmatprep.subr.mxu0 0.0
    %v1345 = vand.u32 %v195, 4294901760
    %1346 = vmatpush1.msra.mxu0 %v1345
    %1347 = vmatprep.subr.mxu0 0.0
    %v1348 = vand.u32 %v196, 4294901760
    %1349 = vmatpush1.msra.mxu0 %v1348
    %1350 = vmatprep.subr.mxu0 0.0
    %v1351 = vand.u32 %v197, 4294901760
    %1352 = vmatpush1.msra.mxu0 %v1351
    %1353 = vmatprep.subr.mxu0 0.0
    %v1354 = vand.u32 %v198, 4294901760
    %1355 = vmatpush1.msra.mxu0 %v1354
    %1356 = vmatprep.subr.mxu0 0.0
    %1357 = vmatpush1.msra.mxu0 0.0
    %1358 = vmatprep.subr.mxu0 0.0
    %1359 = vmatpush1.msra.mxu0 0.0
    %1360 = vmatprep.subr.mxu0 0.0
    %1361 = vmatpush1.msra.mxu0 0.0
    %1362 = vmatprep.subr.mxu0 0.0
    %1363 = vmatpush1.msra.mxu0 0.0
    %1364 = vmatprep.subr.mxu0 0.0
    %1365 = vmatpush1.msra.mxu0 0.0
    %1366 = vmatprep.subr.mxu0 0.0
    %1367 = vmatpush1.msra.mxu0 0.0
    %1368 = vmatprep.subr.mxu0 0.0
    %1369 = vmatpush1.msra.mxu0 0.0
    %1370 = vmatprep.subr.mxu0 0.0
    %1371 = vmatpush1.msra.mxu0 0.0
    %1372 = vmatprep.subr.mxu0 0.0
    %1373 = vmatpush1.msra.mxu0 0.0
    %1374 = vmatprep.subr.mxu0 0.0
    %1375 = vmatpush1.msra.mxu0 0.0
    %1376 = vmatprep.subr.mxu0 0.0
    %1377 = vmatpush1.msra.mxu0 0.0
    %1378 = vmatprep.subr.mxu0 0.0
    %1379 = vmatpush1.msra.mxu0 0.0
    %1380 = vmatprep.subr.mxu0 0.0
    %1381 = vmatpush1.msra.mxu0 0.0
    %1382 = vmatprep.subr.mxu0 0.0
    %1383 = vmatpush1.msra.mxu0 0.0
    %1384 = vmatprep.subr.mxu0 0.0
    %1385 = vmatpush1.msra.mxu0 0.0
    %1386 = vmatprep.subr.mxu0 0.0
    %1387 = vmatpush1.msra.mxu0 0.0
    %1388 = vmatprep.mubr.f32.mxu0 0.0
    %v1389 = vand.u32 %v167, 4294901760
    %1390 = vmatmul.mubr.f32.gmra.mrb[0].mxu0 %v1389
    %v1391 = vpop.f32.mrb[0].mxu0
    %v1392 = vadd.f32 %v1215, %v1391
    %v1393 = vpop.f32.mrb[0].mxu0
    %1394 = vmatprep.mubr.f32.mxu0 0.0
    %v1395 = vand.u32 %v168, 4294901760
    %1396 = vmatmul.mubr.f32.gmra.mrb[0].mxu0 %v1395
    %v1397 = vpop.f32.mrb[0].mxu0
    %v1398 = vadd.f32 %v1221, %v1397
    %v1399 = vpop.f32.mrb[0].mxu0
    %1400 = vmatprep.mubr.f32.mxu0 0.0
    %v1401 = vand.u32 %v169, 4294901760
    %1402 = vmatmul.mubr.f32.gmra.mrb[0].mxu0 %v1401
    %v1403 = vpop.f32.mrb[0].mxu0
    %v1404 = vadd.f32 %v1227, %v1403
    %v1405 = vpop.f32.mrb[0].mxu0
    %1406 = vmatprep.mubr.f32.mxu0 0.0
    %v1407 = vand.u32 %v170, 4294901760
    %1408 = vmatmul.mubr.f32.gmra.mrb[0].mxu0 %v1407
    %v1409 = vpop.f32.mrb[0].mxu0
    %v1410 = vadd.f32 %v1233, %v1409
    %v1411 = vpop.f32.mrb[0].mxu0
    %1412 = vmatprep.mubr.f32.mxu0 0.0
    %v1413 = vand.u32 %v171, 4294901760
    %1414 = vmatmul.mubr.f32.gmra.mrb[0].mxu0 %v1413
    %v1415 = vpop.f32.mrb[0].mxu0
    %v1416 = vadd.f32 %v1239, %v1415
    %v1417 = vpop.f32.mrb[0].mxu0
    %1418 = vmatprep.mubr.f32.mxu0 0.0
    %v1419 = vand.u32 %v172, 4294901760
    %1420 = vmatmul.mubr.f32.gmra.mrb[0].mxu0 %v1419
    %v1421 = vpop.f32.mrb[0].mxu0
    %v1422 = vadd.f32 %v1245, %v1421
    %v1423 = vpop.f32.mrb[0].mxu0
    %1424 = vmatprep.mubr.f32.mxu0 0.0
    %v1425 = vand.u32 %v173, 4294901760
    %1426 = vmatmul.mubr.f32.gmra.mrb[0].mxu0 %v1425
    %v1427 = vpop.f32.mrb[0].mxu0
    %v1428 = vadd.f32 %v1251, %v1427
    %v1429 = vpop.f32.mrb[0].mxu0
    %1430 = vmatprep.mubr.f32.mxu0 0.0
    %v1431 = vand.u32 %v174, 4294901760
    %1432 = vmatmul.mubr.f32.gmra.mrb[0].mxu0 %v1431
    %v1433 = vpop.f32.mrb[0].mxu0
    %v1434 = vadd.f32 %v1257, %v1433
    %v1435 = vpop.f32.mrb[0].mxu0
    %1436 = vmatprep.mubr.f32.mxu0 0.0
    %v1437 = vand.u32 %v175, 4294901760
    %1438 = vmatmul.mubr.f32.gmra.mrb[0].mxu0 %v1437
    %v1439 = vpop.f32.mrb[0].mxu0
    %v1440 = vadd.f32 %v1263, %v1439
    %v1441 = vpop.f32.mrb[0].mxu0
    %1442 = vmatprep.mubr.f32.mxu0 0.0
    %v1443 = vand.u32 %v176, 4294901760
    %1444 = vmatmul.mubr.f32.gmra.mrb[0].mxu0 %v1443
    %v1445 = vpop.f32.mrb[0].mxu0
    %v1446 = vadd.f32 %v1269, %v1445
    %v1447 = vpop.f32.mrb[0].mxu0
    %1448 = vmatprep.mubr.f32.mxu0 0.0
    %v1449 = vand.u32 %v177, 4294901760
    %1450 = vmatmul.mubr.f32.gmra.mrb[0].mxu0 %v1449
    %v1451 = vpop.f32.mrb[0].mxu0
    %v1452 = vadd.f32 %v1275, %v1451
    %v1453 = vpop.f32.mrb[0].mxu0
    %1454 = vmatprep.mubr.f32.mxu0 0.0
    %v1455 = vand.u32 %v178, 4294901760
    %1456 = vmatmul.mubr.f32.gmra.mrb[0].mxu0 %v1455
    %v1457 = vpop.f32.mrb[0].mxu0
    %v1458 = vadd.f32 %v1281, %v1457
    %v1459 = vpop.f32.mrb[0].mxu0
    %1460 = vmatprep.mubr.f32.mxu0 0.0
    %v1461 = vand.u32 %v179, 4294901760
    %1462 = vmatmul.mubr.f32.gmra.mrb[0].mxu0 %v1461
    %v1463 = vpop.f32.mrb[0].mxu0
    %v1464 = vadd.f32 %v1287, %v1463
    %v1465 = vpop.f32.mrb[0].mxu0
    %1466 = vmatprep.mubr.f32.mxu0 0.0
    %v1467 = vand.u32 %v180, 4294901760
    %1468 = vmatmul.mubr.f32.gmra.mrb[0].mxu0 %v1467
    %v1469 = vpop.f32.mrb[0].mxu0
    %v1470 = vadd.f32 %v1293, %v1469
    %v1471 = vpop.f32.mrb[0].mxu0
    %1472 = vmatprep.mubr.f32.mxu0 0.0
    %v1473 = vand.u32 %v181, 4294901760
    %1474 = vmatmul.mubr.f32.gmra.mrb[0].mxu0 %v1473
    %v1475 = vpop.f32.mrb[0].mxu0
    %v1476 = vadd.f32 %v1299, %v1475
    %v1477 = vpop.f32.mrb[0].mxu0
    %1478 = vmatprep.mubr.f32.mxu0 0.0
    %v1479 = vand.u32 %v182, 4294901760
    %1480 = vmatmul.mubr.f32.gmra.mrb[0].mxu0 %v1479
    %v1481 = vpop.f32.mrb[0].mxu0
    %v1482 = vadd.f32 %v1305, %v1481
    %v1483 = vpop.f32.mrb[0].mxu0
    %1484 = vdwg.mxu0
    %v1485 = vmul.f32 %v1392, %v1392
    %v1486 = vmul.f32 %v1398, %v1398
    %v1487 = vmul.f32 %v1404, %v1404
    %v1488 = vmul.f32 %v1410, %v1410
    %v1489 = vmul.f32 %v1416, %v1416
    %v1490 = vmul.f32 %v1422, %v1422
    %v1491 = vmul.f32 %v1428, %v1428
    %v1492 = vmul.f32 %v1434, %v1434
    %v1493 = vmul.f32 %v1440, %v1440
    %v1494 = vmul.f32 %v1446, %v1446
    %v1495 = vmul.f32 %v1452, %v1452
    %v1496 = vmul.f32 %v1458, %v1458
    %v1497 = vmul.f32 %v1464, %v1464
    %v1498 = vmul.f32 %v1470, %v1470
    %v1499 = vmul.f32 %v1476, %v1476
    %v1500 = vmul.f32 %v1482, %v1482
    %1501 = vadd.xlane.f32.xlu0 %v1485
    %v1502 = vpop.xlane.xlu0 %1501
    %1503 = vadd.xlane.f32.xlu0 %v1486
    %v1504 = vpop.xlane.xlu0 %1503
    %1505 = vadd.xlane.f32.xlu0 %v1487
    %v1506 = vpop.xlane.xlu0 %1505
    %1507 = vadd.xlane.f32.xlu0 %v1488
    %v1508 = vpop.xlane.xlu0 %1507
    %1509 = vadd.xlane.f32.xlu0 %v1489
    %v1510 = vpop.xlane.xlu0 %1509
    %1511 = vadd.xlane.f32.xlu0 %v1490
    %v1512 = vpop.xlane.xlu0 %1511
    %1513 = vadd.xlane.f32.xlu0 %v1491
    %v1514 = vpop.xlane.xlu0 %1513
    %1515 = vadd.xlane.f32.xlu0 %v1492
    %v1516 = vpop.xlane.xlu0 %1515
    %1517 = vadd.xlane.f32.xlu0 %v1493
    %v1518 = vpop.xlane.xlu0 %1517
    %1519 = vadd.xlane.f32.xlu0 %v1494
    %v1520 = vpop.xlane.xlu0 %1519
    %1521 = vadd.xlane.f32.xlu0 %v1495
    %v1522 = vpop.xlane.xlu0 %1521
    %1523 = vadd.xlane.f32.xlu0 %v1496
    %v1524 = vpop.xlane.xlu0 %1523
    %1525 = vadd.xlane.f32.xlu0 %v1497
    %v1526 = vpop.xlane.xlu0 %1525
    %1527 = vadd.xlane.f32.xlu0 %v1498
    %v1528 = vpop.xlane.xlu0 %1527
    %1529 = vadd.xlane.f32.xlu0 %v1499
    %v1530 = vpop.xlane.xlu0 %1529
    %1531 = vadd.xlane.f32.xlu0 %v1500
    %v1532 = vpop.xlane.xlu0 %1531
    %v1533 = vlaneseq
    %v1534 = vshrl.u32 %v1533, 7
    %v1535 = vadd.s32 %v1534, 8
    %v1536 = vadd.s32 %v1534, 16
    %v1537 = vadd.s32 %v1534, 24
    %v1538 = vadd.s32 %v1534, 32
    %v1539 = vadd.s32 %v1534, 40
    %v1540 = vadd.s32 %v1534, 48
    %v1541 = vadd.s32 %v1534, 56
    %v1542 = vadd.s32 %v1534, 64
    %v1543 = vadd.s32 %v1534, 72
    %v1544 = vadd.s32 %v1534, 80
    %v1545 = vadd.s32 %v1534, 88
    %v1546 = vadd.s32 %v1534, 96
    %v1547 = vadd.s32 %v1534, 104
    %v1548 = vadd.s32 %v1534, 112
    %v1549 = vadd.s32 %v1534, 120
    %vm1550 = vcmp.ge.s32.totalorder %v1534, 0
    %vm1551 = vcmp.ge.s32.totalorder %v1535, 0
    %vm1552 = vcmp.ge.s32.totalorder %v1536, 0
    %vm1553 = vcmp.ge.s32.totalorder %v1537, 0
    %vm1554 = vcmp.ge.s32.totalorder %v1538, 0
    %vm1555 = vcmp.ge.s32.totalorder %v1539, 0
    %vm1556 = vcmp.ge.s32.totalorder %v1540, 0
    %vm1557 = vcmp.ge.s32.totalorder %v1541, 0
    %vm1558 = vcmp.ge.s32.totalorder %v1542, 0
    %vm1559 = vcmp.ge.s32.totalorder %v1543, 0
    %vm1560 = vcmp.ge.s32.totalorder %v1544, 0
    %vm1561 = vcmp.ge.s32.totalorder %v1545, 0
    %vm1562 = vcmp.ge.s32.totalorder %v1546, 0
    %vm1563 = vcmp.ge.s32.totalorder %v1547, 0
    %vm1564 = vcmp.ge.s32.totalorder %v1548, 0
    %vm1565 = vcmp.ge.s32.totalorder %v1549, 0
    %vm1566 = vcmp.lt.s32.totalorder %v1534, 64
    %vm1567 = vcmp.lt.s32.totalorder %v1535, 64
    %vm1568 = vcmp.lt.s32.totalorder %v1536, 64
    %vm1569 = vcmp.lt.s32.totalorder %v1537, 64
    %vm1570 = vcmp.lt.s32.totalorder %v1538, 64
    %vm1571 = vcmp.lt.s32.totalorder %v1539, 64
    %vm1572 = vcmp.lt.s32.totalorder %v1540, 64
    %vm1573 = vcmp.lt.s32.totalorder %v1541, 64
    %vm1574 = vcmp.lt.s32.totalorder %v1542, 64
    %vm1575 = vcmp.lt.s32.totalorder %v1543, 64
    %vm1576 = vcmp.lt.s32.totalorder %v1544, 64
    %vm1577 = vcmp.lt.s32.totalorder %v1545, 64
    %vm1578 = vcmp.lt.s32.totalorder %v1546, 64
    %vm1579 = vcmp.lt.s32.totalorder %v1547, 64
    %vm1580 = vcmp.lt.s32.totalorder %v1548, 64
    %vm1581 = vcmp.lt.s32.totalorder %v1549, 64
    %vm1582 = vmand %vm1550, %vm1566
    %vm1583 = vmand %vm1551, %vm1567
    %vm1584 = vmand %vm1552, %vm1568
    %vm1585 = vmand %vm1553, %vm1569
    %vm1586 = vmand %vm1554, %vm1570
    %vm1587 = vmand %vm1555, %vm1571
    %vm1588 = vmand %vm1556, %vm1572
    %vm1589 = vmand %vm1557, %vm1573
    %vm1590 = vmand %vm1558, %vm1574
    %vm1591 = vmand %vm1559, %vm1575
    %vm1592 = vmand %vm1560, %vm1576
    %vm1593 = vmand %vm1561, %vm1577
    %vm1594 = vmand %vm1562, %vm1578
    %vm1595 = vmand %vm1563, %vm1579
    %vm1596 = vmand %vm1564, %vm1580
    %vm1597 = vmand %vm1565, %vm1581
    %v1598 = vsel %vm1582, %v1502, 0.0
    %v1599 = vsel %vm1583, %v1504, 0.0
    %v1600 = vsel %vm1584, %v1506, 0.0
    %v1601 = vsel %vm1585, %v1508, 0.0
    %v1602 = vsel %vm1586, %v1510, 0.0
    %v1603 = vsel %vm1587, %v1512, 0.0
    %v1604 = vsel %vm1588, %v1514, 0.0
    %v1605 = vsel %vm1589, %v1516, 0.0
    %v1606 = vsel %vm1590, %v1518, 0.0
    %v1607 = vsel %vm1591, %v1520, 0.0
    %v1608 = vsel %vm1592, %v1522, 0.0
    %v1609 = vsel %vm1593, %v1524, 0.0
    %v1610 = vsel %vm1594, %v1526, 0.0
    %v1611 = vsel %vm1595, %v1528, 0.0
    %v1612 = vsel %vm1596, %v1530, 0.0
    %v1613 = vsel %vm1597, %v1532, 0.0
    %vm1614 = vcmask 7168
    %v1615 = vsel %vm1614, %v1598, 0.0
    %v1616 = vsel %vm1614, %v1599, 0.0
    %v1617 = vadd.f32 %v1615, %v1616
    %v1618 = vsel %vm1614, %v1600, 0.0
    %v1619 = vadd.f32 %v1617, %v1618
    %v1620 = vsel %vm1614, %v1601, 0.0
    %v1621 = vadd.f32 %v1619, %v1620
    %v1622 = vsel %vm1614, %v1602, 0.0
    %v1623 = vadd.f32 %v1621, %v1622
    %v1624 = vsel %vm1614, %v1603, 0.0
    %v1625 = vadd.f32 %v1623, %v1624
    %v1626 = vsel %vm1614, %v1604, 0.0
    %v1627 = vadd.f32 %v1625, %v1626
    %v1628 = vsel %vm1614, %v1605, 0.0
    %v1629 = vadd.f32 %v1627, %v1628
    %v1630 = vsel %vm1614, %v1606, 0.0
    %v1631 = vadd.f32 %v1629, %v1630
    %v1632 = vsel %vm1614, %v1607, 0.0
    %v1633 = vadd.f32 %v1631, %v1632
    %v1634 = vsel %vm1614, %v1608, 0.0
    %v1635 = vadd.f32 %v1633, %v1634
    %v1636 = vsel %vm1614, %v1609, 0.0
    %v1637 = vadd.f32 %v1635, %v1636
    %v1638 = vsel %vm1614, %v1610, 0.0
    %v1639 = vadd.f32 %v1637, %v1638
    %v1640 = vsel %vm1614, %v1611, 0.0
    %v1641 = vadd.f32 %v1639, %v1640
    %v1642 = vsel %vm1614, %v1612, 0.0
    %v1643 = vadd.f32 %v1641, %v1642
    %v1644 = vsel %vm1614, %v1613, 0.0
    %v1645 = vadd.f32 %v1643, %v1644
    %1646 = vadd.xlane.f32.xlu0 %v1645
    %v1647 = vpop.xlane.xlu0 %1646
    %v1648 = vrot.slane %v1647, 4
    %v1649 = vadd.f32 %v1647, %v1648
    %v1650 = vrot.slane %v1649, 2
    %v1651 = vadd.f32 %v1649, %v1650
    %v1652 = vrot.slane %v1651, 1
    %v1653 = vadd.f32 %v1651, %v1652
    %s1654 = vtos %v1653
    %v1655 = vstv %s1654
    %v1656 = vmul.f32 %v1655, 0.00012207031
    %v1657 = vrsqrt.pop %v1656
    %v1658 = vsel %vm1582, %v1657, 0.0
    %v1659 = vsel %vm1583, %v1657, 0.0
    %v1660 = vsel %vm1584, %v1657, 0.0
    %v1661 = vsel %vm1585, %v1657, 0.0
    %v1662 = vsel %vm1586, %v1657, 0.0
    %v1663 = vsel %vm1587, %v1657, 0.0
    %v1664 = vsel %vm1588, %v1657, 0.0
    %v1665 = vsel %vm1589, %v1657, 0.0
    %v1666 = vsel %vm1590, %v1657, 0.0
    %v1667 = vsel %vm1591, %v1657, 0.0
    %v1668 = vsel %vm1592, %v1657, 0.0
    %v1669 = vsel %vm1593, %v1657, 0.0
    %v1670 = vsel %vm1594, %v1657, 0.0
    %v1671 = vsel %vm1595, %v1657, 0.0
    %v1672 = vsel %vm1596, %v1657, 0.0
    %v1673 = vsel %vm1597, %v1657, 0.0
    %vm1674 = vcmp.ge.s32.totalorder %v1534, 64
    %vm1675 = vcmp.ge.s32.totalorder %v1535, 64
    %vm1676 = vcmp.ge.s32.totalorder %v1536, 64
    %vm1677 = vcmp.ge.s32.totalorder %v1537, 64
    %vm1678 = vcmp.ge.s32.totalorder %v1538, 64
    %vm1679 = vcmp.ge.s32.totalorder %v1539, 64
    %vm1680 = vcmp.ge.s32.totalorder %v1540, 64
    %vm1681 = vcmp.ge.s32.totalorder %v1541, 64
    %vm1682 = vcmp.ge.s32.totalorder %v1542, 64
    %vm1683 = vcmp.ge.s32.totalorder %v1543, 64
    %vm1684 = vcmp.ge.s32.totalorder %v1544, 64
    %vm1685 = vcmp.ge.s32.totalorder %v1545, 64
    %vm1686 = vcmp.ge.s32.totalorder %v1546, 64
    %vm1687 = vcmp.ge.s32.totalorder %v1547, 64
    %vm1688 = vcmp.ge.s32.totalorder %v1548, 64
    %vm1689 = vcmp.ge.s32.totalorder %v1549, 64
    %vm1690 = vcmp.lt.s32.totalorder %v1534, 128
    %vm1691 = vcmp.lt.s32.totalorder %v1535, 128
    %vm1692 = vcmp.lt.s32.totalorder %v1536, 128
    %vm1693 = vcmp.lt.s32.totalorder %v1537, 128
    %vm1694 = vcmp.lt.s32.totalorder %v1538, 128
    %vm1695 = vcmp.lt.s32.totalorder %v1539, 128
    %vm1696 = vcmp.lt.s32.totalorder %v1540, 128
    %vm1697 = vcmp.lt.s32.totalorder %v1541, 128
    %vm1698 = vcmp.lt.s32.totalorder %v1542, 128
    %vm1699 = vcmp.lt.s32.totalorder %v1543, 128
    %vm1700 = vcmp.lt.s32.totalorder %v1544, 128
    %vm1701 = vcmp.lt.s32.totalorder %v1545, 128
    %vm1702 = vcmp.lt.s32.totalorder %v1546, 128
    %vm1703 = vcmp.lt.s32.totalorder %v1547, 128
    %vm1704 = vcmp.lt.s32.totalorder %v1548, 128
    %vm1705 = vcmp.lt.s32.totalorder %v1549, 128
    %vm1706 = vmand %vm1674, %vm1690
    %vm1707 = vmand %vm1675, %vm1691
    %vm1708 = vmand %vm1676, %vm1692
    %vm1709 = vmand %vm1677, %vm1693
    %vm1710 = vmand %vm1678, %vm1694
    %vm1711 = vmand %vm1679, %vm1695
    %vm1712 = vmand %vm1680, %vm1696
    %vm1713 = vmand %vm1681, %vm1697
    %vm1714 = vmand %vm1682, %vm1698
    %vm1715 = vmand %vm1683, %vm1699
    %vm1716 = vmand %vm1684, %vm1700
    %vm1717 = vmand %vm1685, %vm1701
    %vm1718 = vmand %vm1686, %vm1702
    %vm1719 = vmand %vm1687, %vm1703
    %vm1720 = vmand %vm1688, %vm1704
    %vm1721 = vmand %vm1689, %vm1705
    %v1722 = vsel %vm1706, %v1502, 0.0
    %v1723 = vsel %vm1707, %v1504, 0.0
    %v1724 = vsel %vm1708, %v1506, 0.0
    %v1725 = vsel %vm1709, %v1508, 0.0
    %v1726 = vsel %vm1710, %v1510, 0.0
    %v1727 = vsel %vm1711, %v1512, 0.0
    %v1728 = vsel %vm1712, %v1514, 0.0
    %v1729 = vsel %vm1713, %v1516, 0.0
    %v1730 = vsel %vm1714, %v1518, 0.0
    %v1731 = vsel %vm1715, %v1520, 0.0
    %v1732 = vsel %vm1716, %v1522, 0.0
    %v1733 = vsel %vm1717, %v1524, 0.0
    %v1734 = vsel %vm1718, %v1526, 0.0
    %v1735 = vsel %vm1719, %v1528, 0.0
    %v1736 = vsel %vm1720, %v1530, 0.0
    %v1737 = vsel %vm1721, %v1532, 0.0
    %v1738 = vsel %vm1614, %v1722, 0.0
    %v1739 = vsel %vm1614, %v1723, 0.0
    %v1740 = vadd.f32 %v1738, %v1739
    %v1741 = vsel %vm1614, %v1724, 0.0
    %v1742 = vadd.f32 %v1740, %v1741
    %v1743 = vsel %vm1614, %v1725, 0.0
    %v1744 = vadd.f32 %v1742, %v1743
    %v1745 = vsel %vm1614, %v1726, 0.0
    %v1746 = vadd.f32 %v1744, %v1745
    %v1747 = vsel %vm1614, %v1727, 0.0
    %v1748 = vadd.f32 %v1746, %v1747
    %v1749 = vsel %vm1614, %v1728, 0.0
    %v1750 = vadd.f32 %v1748, %v1749
    %v1751 = vsel %vm1614, %v1729, 0.0
    %v1752 = vadd.f32 %v1750, %v1751
    %v1753 = vsel %vm1614, %v1730, 0.0
    %v1754 = vadd.f32 %v1752, %v1753
    %v1755 = vsel %vm1614, %v1731, 0.0
    %v1756 = vadd.f32 %v1754, %v1755
    %v1757 = vsel %vm1614, %v1732, 0.0
    %v1758 = vadd.f32 %v1756, %v1757
    %v1759 = vsel %vm1614, %v1733, 0.0
    %v1760 = vadd.f32 %v1758, %v1759
    %v1761 = vsel %vm1614, %v1734, 0.0
    %v1762 = vadd.f32 %v1760, %v1761
    %v1763 = vsel %vm1614, %v1735, 0.0
    %v1764 = vadd.f32 %v1762, %v1763
    %v1765 = vsel %vm1614, %v1736, 0.0
    %v1766 = vadd.f32 %v1764, %v1765
    %v1767 = vsel %vm1614, %v1737, 0.0
    %v1768 = vadd.f32 %v1766, %v1767
    %1769 = vadd.xlane.f32.xlu0 %v1768
    %v1770 = vpop.xlane.xlu0 %1769
    %v1771 = vrot.slane %v1770, 4
    %v1772 = vadd.f32 %v1770, %v1771
    %v1773 = vrot.slane %v1772, 2
    %v1774 = vadd.f32 %v1772, %v1773
    %v1775 = vrot.slane %v1774, 1
    %v1776 = vadd.f32 %v1774, %v1775
    %s1777 = vtos %v1776
    %v1778 = vstv %s1777
    %v1779 = vmul.f32 %v1778, 0.00012207031
    %v1780 = vrsqrt.pop %v1779
    %v1781 = vsel %vm1706, %v1780, %v1658
    %v1782 = vsel %vm1707, %v1780, %v1659
    %v1783 = vsel %vm1708, %v1780, %v1660
    %v1784 = vsel %vm1709, %v1780, %v1661
    %v1785 = vsel %vm1710, %v1780, %v1662
    %v1786 = vsel %vm1711, %v1780, %v1663
    %v1787 = vsel %vm1712, %v1780, %v1664
    %v1788 = vsel %vm1713, %v1780, %v1665
    %v1789 = vsel %vm1714, %v1780, %v1666
    %v1790 = vsel %vm1715, %v1780, %v1667
    %v1791 = vsel %vm1716, %v1780, %v1668
    %v1792 = vsel %vm1717, %v1780, %v1669
    %v1793 = vsel %vm1718, %v1780, %v1670
    %v1794 = vsel %vm1719, %v1780, %v1671
    %v1795 = vsel %vm1720, %v1780, %v1672
    %v1796 = vsel %vm1721, %v1780, %v1673
    %v1797 = vmul.f32 %v1392, %v1781
    %v1798 = vmul.f32 %v1398, %v1782
    %v1799 = vmul.f32 %v1404, %v1783
    %v1800 = vmul.f32 %v1410, %v1784
    %v1801 = vmul.f32 %v1416, %v1785
    %v1802 = vmul.f32 %v1422, %v1786
    %v1803 = vmul.f32 %v1428, %v1787
    %v1804 = vmul.f32 %v1434, %v1788
    %v1805 = vmul.f32 %v1440, %v1789
    %v1806 = vmul.f32 %v1446, %v1790
    %v1807 = vmul.f32 %v1452, %v1791
    %v1808 = vmul.f32 %v1458, %v1792
    %v1809 = vmul.f32 %v1464, %v1793
    %v1810 = vmul.f32 %v1470, %v1794
    %v1811 = vmul.f32 %v1476, %v1795
    %v1812 = vmul.f32 %v1482, %v1796
    %v1813 = vld [vmem:[#allocation2] sm:$0xff]
    %v1814 = vld [vmem:[#allocation2 + $0x8] sm:$0xff]
    %v1815 = vld [vmem:[#allocation2 + $0x10] sm:$0xff]
    %v1816 = vld [vmem:[#allocation2 + $0x18] sm:$0xff]
    %v1817 = vld [vmem:[#allocation2 + $0x20] sm:$0xff]
    %v1818 = vld [vmem:[#allocation2 + $0x28] sm:$0xff]
    %v1819 = vld [vmem:[#allocation2 + $0x30] sm:$0xff]
    %v1820 = vld [vmem:[#allocation2 + $0x38] sm:$0xff]
    %v1821 = vld [vmem:[#allocation2 + $0x40] sm:$0xff]
    %v1822 = vld [vmem:[#allocation2 + $0x48] sm:$0xff]
    %v1823 = vld [vmem:[#allocation2 + $0x50] sm:$0xff]
    %v1824 = vld [vmem:[#allocation2 + $0x58] sm:$0xff]
    %v1825 = vld [vmem:[#allocation2 + $0x60] sm:$0xff]
    %v1826 = vld [vmem:[#allocation2 + $0x68] sm:$0xff]
    %v1827 = vld [vmem:[#allocation2 + $0x70] sm:$0xff]
    %v1828 = vld [vmem:[#allocation2 + $0x78] sm:$0xff]
    %v1829 = vmul.f32 %v1797, %v1813
    %v1830 = vmul.f32 %v1798, %v1814
    %v1831 = vmul.f32 %v1799, %v1815
    %v1832 = vmul.f32 %v1800, %v1816
    %v1833 = vmul.f32 %v1801, %v1817
    %v1834 = vmul.f32 %v1802, %v1818
    %v1835 = vmul.f32 %v1803, %v1819
    %v1836 = vmul.f32 %v1804, %v1820
    %v1837 = vmul.f32 %v1805, %v1821
    %v1838 = vmul.f32 %v1806, %v1822
    %v1839 = vmul.f32 %v1807, %v1823
    %v1840 = vmul.f32 %v1808, %v1824
    %v1841 = vmul.f32 %v1809, %v1825
    %v1842 = vmul.f32 %v1810, %v1826
    %v1843 = vmul.f32 %v1811, %v1827
    %v1844 = vmul.f32 %v1812, %v1828
    %v1845 = vpack.c.bf16 %v1830, %v1829
    %v1846 = vpack.c.bf16 %v1832, %v1831
    %v1847 = vpack.c.bf16 %v1834, %v1833
    %v1848 = vpack.c.bf16 %v1836, %v1835
    %v1849 = vpack.c.bf16 %v1838, %v1837
    %v1850 = vpack.c.bf16 %v1840, %v1839
    %v1851 = vpack.c.bf16 %v1842, %v1841
    %v1852 = vpack.c.bf16 %v1844, %v1843
    %v1853 = vld [vmem:[#allocation5] sm:$0xf]
    %v1854 = vld [vmem:[#allocation5 + $0x4] sm:$0xf]
    %v1855 = vld [vmem:[#allocation5 + $0x8] sm:$0xf]
    %v1856 = vld [vmem:[#allocation5 + $0xc] sm:$0xf]
    %v1857 = vld [vmem:[#allocation5 + $0x10] sm:$0xf]
    %v1858 = vld [vmem:[#allocation5 + $0x14] sm:$0xf]
    %v1859 = vld [vmem:[#allocation5 + $0x18] sm:$0xf]
    %v1860 = vld [vmem:[#allocation5 + $0x1c] sm:$0xf]
    %v1861 = vld [vmem:[#allocation5 + $0x20] sm:$0xf]
    %v1862 = vld [vmem:[#allocation5 + $0x24] sm:$0xf]
    %v1863 = vld [vmem:[#allocation5 + $0x28] sm:$0xf]
    %v1864 = vld [vmem:[#allocation5 + $0x2c] sm:$0xf]
    %v1865 = vld [vmem:[#allocation5 + $0x30] sm:$0xf]
    %v1866 = vld [vmem:[#allocation5 + $0x34] sm:$0xf]
    %v1867 = vld [vmem:[#allocation5 + $0x38] sm:$0xf]
    %v1868 = vld [vmem:[#allocation5 + $0x3c] sm:$0xf]
    %v1869 = vld [vmem:[%s4] sm:$0x1]
    %v1871 = vlaneseq
    %v1872 = vshrl.u32 %v1871, 7
    %v1873 = vsub.s32 0, %v1872
    %v1874 = vrot.slane %v1869, %v1873
    %v1892 = vunpack.c.l.b16 %v1853
    %v1893 = vunpack.c.l.b16 %v1854
    %v1894 = vunpack.c.l.b16 %v1855
    %v1895 = vunpack.c.l.b16 %v1856
    %v1896 = vunpack.c.l.b16 %v1857
    %v1897 = vunpack.c.l.b16 %v1858
    %v1898 = vunpack.c.l.b16 %v1859
    %v1899 = vunpack.c.l.b16 %v1860
    %v1900 = vunpack.c.l.b16 %v1861
    %v1901 = vunpack.c.l.b16 %v1862
    %v1902 = vunpack.c.l.b16 %v1863
    %v1903 = vunpack.c.l.b16 %v1864
    %v1904 = vunpack.c.l.b16 %v1865
    %v1905 = vunpack.c.l.b16 %v1866
    %v1906 = vunpack.c.l.b16 %v1867
    %v1907 = vunpack.c.l.b16 %v1868
    %v1908 = vpack.c.b16 %v1893, %v1892
    %v1909 = vpack.c.b16 %v1895, %v1894
    %v1910 = vpack.c.b16 %v1897, %v1896
    %v1911 = vpack.c.b16 %v1899, %v1898
    %v1912 = vpack.c.b16 %v1901, %v1900
    %v1913 = vpack.c.b16 %v1903, %v1902
    %v1914 = vpack.c.b16 %v1905, %v1904
    %v1915 = vpack.c.b16 %v1907, %v1906
    %1924 = vmatprep.subr.bf16.mxu0 0
    %1925 = vmatpush1.bf16.msra.mxu0 %v1908
    %1926 = vmatprep.subr.bf16.mxu0 0
    %1927 = vmatpush1.bf16.msra.mxu0 %v1909
    %1928 = vmatprep.subr.bf16.mxu0 0
    %1929 = vmatpush1.bf16.msra.mxu0 %v1910
    %1930 = vmatprep.subr.bf16.mxu0 0
    %1931 = vmatpush1.bf16.msra.mxu0 %v1911
    %1932 = vmatprep.subr.bf16.mxu0 0
    %1933 = vmatpush1.bf16.msra.mxu0 %v1912
    %1934 = vmatprep.subr.bf16.mxu0 0
    %1935 = vmatpush1.bf16.msra.mxu0 %v1913
    %1936 = vmatprep.subr.bf16.mxu0 0
    %1937 = vmatpush1.bf16.msra.mxu0 %v1914
    %1938 = vmatprep.subr.bf16.mxu0 0
    %1939 = vmatpush1.bf16.msra.mxu0 %v1915
    %1940 = vmatprep.subr.bf16.mxu0 0
    %1941 = vmatpush1.bf16.msra.mxu0 0
    %1942 = vmatprep.subr.bf16.mxu0 0
    %1943 = vmatpush1.bf16.msra.mxu0 0
    %1944 = vmatprep.subr.bf16.mxu0 0
    %1945 = vmatpush1.bf16.msra.mxu0 0
    %1946 = vmatprep.subr.bf16.mxu0 0
    %1947 = vmatpush1.bf16.msra.mxu0 0
    %1948 = vmatprep.subr.bf16.mxu0 0
    %1949 = vmatpush1.bf16.msra.mxu0 0
    %1950 = vmatprep.subr.bf16.mxu0 0
    %1951 = vmatpush1.bf16.msra.mxu0 0
    %1952 = vmatprep.subr.bf16.mxu0 0
    %1953 = vmatpush1.bf16.msra.mxu0 0
    %1954 = vmatprep.subr.bf16.mxu0 0
    %1955 = vmatpush1.bf16.msra.mxu0 0
    %1956 = vmatprep.mubr.bf16.mxu0 0
    %1957 = vmatmul.mubr.bf16.gmra.mrb[0].mxu0 %v1845
    %v1958 = vpop.f32.mrb[0].mxu0
    %v1959 = vadd.f32 %v1874, %v1958
    %v1960 = vpop.f32.mrb[0].mxu0
    %v1961 = vpop.f32.mrb[0].mxu0
    %v1962 = vadd.f32 %v1874, %v1961
    %v1963 = vpop.f32.mrb[0].mxu0
    %1964 = vmatprep.mubr.bf16.mxu0 0
    %1965 = vmatmul.mubr.bf16.gmra.mrb[0].mxu0 %v1846
    %v1966 = vpop.f32.mrb[0].mxu0
    %v1967 = vadd.f32 %v1874, %v1966
    %v1968 = vpop.f32.mrb[0].mxu0
    %v1969 = vpop.f32.mrb[0].mxu0
    %v1970 = vadd.f32 %v1874, %v1969
    %v1971 = vpop.f32.mrb[0].mxu0
    %1972 = vmatprep.mubr.bf16.mxu0 0
    %1973 = vmatmul.mubr.bf16.gmra.mrb[0].mxu0 %v1847
    %v1974 = vpop.f32.mrb[0].mxu0
    %v1975 = vadd.f32 %v1874, %v1974
    %v1976 = vpop.f32.mrb[0].mxu0
    %v1977 = vpop.f32.mrb[0].mxu0
    %v1978 = vadd.f32 %v1874, %v1977
    %v1979 = vpop.f32.mrb[0].mxu0
    %1980 = vmatprep.mubr.bf16.mxu0 0
    %1981 = vmatmul.mubr.bf16.gmra.mrb[0].mxu0 %v1848
    %v1982 = vpop.f32.mrb[0].mxu0
    %v1983 = vadd.f32 %v1874, %v1982
    %v1984 = vpop.f32.mrb[0].mxu0
    %v1985 = vpop.f32.mrb[0].mxu0
    %v1986 = vadd.f32 %v1874, %v1985
    %v1987 = vpop.f32.mrb[0].mxu0
    %1988 = vmatprep.mubr.bf16.mxu0 0
    %1989 = vmatmul.mubr.bf16.gmra.mrb[0].mxu0 %v1849
    %v1990 = vpop.f32.mrb[0].mxu0
    %v1991 = vadd.f32 %v1874, %v1990
    %v1992 = vpop.f32.mrb[0].mxu0
    %v1993 = vpop.f32.mrb[0].mxu0
    %v1994 = vadd.f32 %v1874, %v1993
    %v1995 = vpop.f32.mrb[0].mxu0
    %1996 = vmatprep.mubr.bf16.mxu0 0
    %1997 = vmatmul.mubr.bf16.gmra.mrb[0].mxu0 %v1850
    %v1998 = vpop.f32.mrb[0].mxu0
    %v1999 = vadd.f32 %v1874, %v1998
    %v2000 = vpop.f32.mrb[0].mxu0
    %v2001 = vpop.f32.mrb[0].mxu0
    %v2002 = vadd.f32 %v1874, %v2001
    %v2003 = vpop.f32.mrb[0].mxu0
    %2004 = vmatprep.mubr.bf16.mxu0 0
    %2005 = vmatmul.mubr.bf16.gmra.mrb[0].mxu0 %v1851
    %v2006 = vpop.f32.mrb[0].mxu0
    %v2007 = vadd.f32 %v1874, %v2006
    %v2008 = vpop.f32.mrb[0].mxu0
    %v2009 = vpop.f32.mrb[0].mxu0
    %v2010 = vadd.f32 %v1874, %v2009
    %v2011 = vpop.f32.mrb[0].mxu0
    %2012 = vmatprep.mubr.bf16.mxu0 0
    %2013 = vmatmul.mubr.bf16.gmra.mrb[0].mxu0 %v1852
    %v2014 = vpop.f32.mrb[0].mxu0
    %v2015 = vadd.f32 %v1874, %v2014
    %v2016 = vpop.f32.mrb[0].mxu0
    %v2017 = vpop.f32.mrb[0].mxu0
    %v2018 = vadd.f32 %v1874, %v2017
    %v2019 = vpop.f32.mrb[0].mxu0
    %2020 = vdwg.mxu0
    %v2021 = vmax.f32 %v1959, 0.0
    %v2022 = vmax.f32 %v1962, 0.0
    %v2023 = vmax.f32 %v1967, 0.0
    %v2024 = vmax.f32 %v1970, 0.0
    %v2025 = vmax.f32 %v1975, 0.0
    %v2026 = vmax.f32 %v1978, 0.0
    %v2027 = vmax.f32 %v1983, 0.0
    %v2028 = vmax.f32 %v1986, 0.0
    %v2029 = vmax.f32 %v1991, 0.0
    %v2030 = vmax.f32 %v1994, 0.0
    %v2031 = vmax.f32 %v1999, 0.0
    %v2032 = vmax.f32 %v2002, 0.0
    %v2033 = vmax.f32 %v2007, 0.0
    %v2034 = vmax.f32 %v2010, 0.0
    %v2035 = vmax.f32 %v2015, 0.0
    %v2036 = vmax.f32 %v2018, 0.0
    %v2037 = vpack.c.bf16 %v2022, %v2021
    %v2038 = vpack.c.bf16 %v2024, %v2023
    %v2039 = vpack.c.bf16 %v2026, %v2025
    %v2040 = vpack.c.bf16 %v2028, %v2027
    %v2041 = vpack.c.bf16 %v2030, %v2029
    %v2042 = vpack.c.bf16 %v2032, %v2031
    %v2043 = vpack.c.bf16 %v2034, %v2033
    %v2044 = vpack.c.bf16 %v2036, %v2035
    %v2045 = vld [vmem:[#allocation7] sm:$0xf]
    %v2046 = vld [vmem:[#allocation7 + $0x4] sm:$0xf]
    %v2047 = vld [vmem:[#allocation7 + $0x8] sm:$0xf]
    %v2048 = vld [vmem:[#allocation7 + $0xc] sm:$0xf]
    %v2049 = vld [vmem:[#allocation7 + $0x10] sm:$0xf]
    %v2050 = vld [vmem:[#allocation7 + $0x14] sm:$0xf]
    %v2051 = vld [vmem:[#allocation7 + $0x18] sm:$0xf]
    %v2052 = vld [vmem:[#allocation7 + $0x1c] sm:$0xf]
    %v2053 = vld [vmem:[#allocation7 + $0x20] sm:$0xf]
    %v2054 = vld [vmem:[#allocation7 + $0x24] sm:$0xf]
    %v2055 = vld [vmem:[#allocation7 + $0x28] sm:$0xf]
    %v2056 = vld [vmem:[#allocation7 + $0x2c] sm:$0xf]
    %v2057 = vld [vmem:[#allocation7 + $0x30] sm:$0xf]
    %v2058 = vld [vmem:[#allocation7 + $0x34] sm:$0xf]
    %v2059 = vld [vmem:[#allocation7 + $0x38] sm:$0xf]
    %v2060 = vld [vmem:[#allocation7 + $0x3c] sm:$0xf]
    %v2061 = vld [vmem:[%s6] sm:$0x1]
    %v2063 = vlaneseq
    %v2064 = vshrl.u32 %v2063, 7
    %v2065 = vsub.s32 0, %v2064
    %v2066 = vrot.slane %v2061, %v2065
    %v2084 = vunpack.c.l.b16 %v2045
    %v2085 = vunpack.c.l.b16 %v2046
    %v2086 = vunpack.c.l.b16 %v2047
    %v2087 = vunpack.c.l.b16 %v2048
    %v2088 = vunpack.c.l.b16 %v2049
    %v2089 = vunpack.c.l.b16 %v2050
    %v2090 = vunpack.c.l.b16 %v2051
    %v2091 = vunpack.c.l.b16 %v2052
    %v2092 = vunpack.c.l.b16 %v2053
    %v2093 = vunpack.c.l.b16 %v2054
    %v2094 = vunpack.c.l.b16 %v2055
    %v2095 = vunpack.c.l.b16 %v2056
    %v2096 = vunpack.c.l.b16 %v2057
    %v2097 = vunpack.c.l.b16 %v2058
    %v2098 = vunpack.c.l.b16 %v2059
    %v2099 = vunpack.c.l.b16 %v2060
    %v2100 = vpack.c.b16 %v2085, %v2084
    %v2101 = vpack.c.b16 %v2087, %v2086
    %v2102 = vpack.c.b16 %v2089, %v2088
    %v2103 = vpack.c.b16 %v2091, %v2090
    %v2104 = vpack.c.b16 %v2093, %v2092
    %v2105 = vpack.c.b16 %v2095, %v2094
    %v2106 = vpack.c.b16 %v2097, %v2096
    %v2107 = vpack.c.b16 %v2099, %v2098
    %2116 = vmatprep.subr.bf16.mxu0 0
    %2117 = vmatpush1.bf16.msra.mxu0 %v2100
    %2118 = vmatprep.subr.bf16.mxu0 0
    %2119 = vmatpush1.bf16.msra.mxu0 %v2101
    %2120 = vmatprep.subr.bf16.mxu0 0
    %2121 = vmatpush1.bf16.msra.mxu0 %v2102
    %2122 = vmatprep.subr.bf16.mxu0 0
    %2123 = vmatpush1.bf16.msra.mxu0 %v2103
    %2124 = vmatprep.subr.bf16.mxu0 0
    %2125 = vmatpush1.bf16.msra.mxu0 %v2104
    %2126 = vmatprep.subr.bf16.mxu0 0
    %2127 = vmatpush1.bf16.msra.mxu0 %v2105
    %2128 = vmatprep.subr.bf16.mxu0 0
    %2129 = vmatpush1.bf16.msra.mxu0 %v2106
    %2130 = vmatprep.subr.bf16.mxu0 0
    %2131 = vmatpush1.bf16.msra.mxu0 %v2107
    %2132 = vmatprep.subr.bf16.mxu0 0
    %2133 = vmatpush1.bf16.msra.mxu0 0
    %2134 = vmatprep.subr.bf16.mxu0 0
    %2135 = vmatpush1.bf16.msra.mxu0 0
    %2136 = vmatprep.subr.bf16.mxu0 0
    %2137 = vmatpush1.bf16.msra.mxu0 0
    %2138 = vmatprep.subr.bf16.mxu0 0
    %2139 = vmatpush1.bf16.msra.mxu0 0
    %2140 = vmatprep.subr.bf16.mxu0 0
    %2141 = vmatpush1.bf16.msra.mxu0 0
    %2142 = vmatprep.subr.bf16.mxu0 0
    %2143 = vmatpush1.bf16.msra.mxu0 0
    %2144 = vmatprep.subr.bf16.mxu0 0
    %2145 = vmatpush1.bf16.msra.mxu0 0
    %2146 = vmatprep.subr.bf16.mxu0 0
    %2147 = vmatpush1.bf16.msra.mxu0 0
    %2148 = vmatprep.mubr.bf16.mxu0 0
    %2149 = vmatmul.mubr.bf16.gmra.mrb[0].mxu0 %v2037
    %v2150 = vpop.f32.mrb[0].mxu0
    %v2151 = vadd.f32 %v2066, %v2150
    %v2152 = vpop.f32.mrb[0].mxu0
    %v2153 = vpop.f32.mrb[0].mxu0
    %v2154 = vadd.f32 %v2066, %v2153
    %v2155 = vpop.f32.mrb[0].mxu0
    %2156 = vmatprep.mubr.bf16.mxu0 0
    %2157 = vmatmul.mubr.bf16.gmra.mrb[0].mxu0 %v2038
    %v2158 = vpop.f32.mrb[0].mxu0
    %v2159 = vadd.f32 %v2066, %v2158
    %v2160 = vpop.f32.mrb[0].mxu0
    %v2161 = vpop.f32.mrb[0].mxu0
    %v2162 = vadd.f32 %v2066, %v2161
    %v2163 = vpop.f32.mrb[0].mxu0
    %2164 = vmatprep.mubr.bf16.mxu0 0
    %2165 = vmatmul.mubr.bf16.gmra.mrb[0].mxu0 %v2039
    %v2166 = vpop.f32.mrb[0].mxu0
    %v2167 = vadd.f32 %v2066, %v2166
    %v2168 = vpop.f32.mrb[0].mxu0
    %v2169 = vpop.f32.mrb[0].mxu0
    %v2170 = vadd.f32 %v2066, %v2169
    %v2171 = vpop.f32.mrb[0].mxu0
    %2172 = vmatprep.mubr.bf16.mxu0 0
    %2173 = vmatmul.mubr.bf16.gmra.mrb[0].mxu0 %v2040
    %v2174 = vpop.f32.mrb[0].mxu0
    %v2175 = vadd.f32 %v2066, %v2174
    %v2176 = vpop.f32.mrb[0].mxu0
    %v2177 = vpop.f32.mrb[0].mxu0
    %v2178 = vadd.f32 %v2066, %v2177
    %v2179 = vpop.f32.mrb[0].mxu0
    %2180 = vmatprep.mubr.bf16.mxu0 0
    %2181 = vmatmul.mubr.bf16.gmra.mrb[0].mxu0 %v2041
    %v2182 = vpop.f32.mrb[0].mxu0
    %v2183 = vadd.f32 %v2066, %v2182
    %v2184 = vpop.f32.mrb[0].mxu0
    %v2185 = vpop.f32.mrb[0].mxu0
    %v2186 = vadd.f32 %v2066, %v2185
    %v2187 = vpop.f32.mrb[0].mxu0
    %2188 = vmatprep.mubr.bf16.mxu0 0
    %2189 = vmatmul.mubr.bf16.gmra.mrb[0].mxu0 %v2042
    %v2190 = vpop.f32.mrb[0].mxu0
    %v2191 = vadd.f32 %v2066, %v2190
    %v2192 = vpop.f32.mrb[0].mxu0
    %v2193 = vpop.f32.mrb[0].mxu0
    %v2194 = vadd.f32 %v2066, %v2193
    %v2195 = vpop.f32.mrb[0].mxu0
    %2196 = vmatprep.mubr.bf16.mxu0 0
    %2197 = vmatmul.mubr.bf16.gmra.mrb[0].mxu0 %v2043
    %v2198 = vpop.f32.mrb[0].mxu0
    %v2199 = vadd.f32 %v2066, %v2198
    %v2200 = vpop.f32.mrb[0].mxu0
    %v2201 = vpop.f32.mrb[0].mxu0
    %v2202 = vadd.f32 %v2066, %v2201
    %v2203 = vpop.f32.mrb[0].mxu0
    %2204 = vmatprep.mubr.bf16.mxu0 0
    %2205 = vmatmul.mubr.bf16.gmra.mrb[0].mxu0 %v2044
    %v2206 = vpop.f32.mrb[0].mxu0
    %v2207 = vadd.f32 %v2066, %v2206
    %v2208 = vpop.f32.mrb[0].mxu0
    %v2209 = vpop.f32.mrb[0].mxu0
    %v2210 = vadd.f32 %v2066, %v2209
    %v2211 = vpop.f32.mrb[0].mxu0
    %2212 = vdwg.mxu0
    %2213 = vst [vmem:[#allocation8] sm:$0xff] %v2151
    %2214 = vst [vmem:[#allocation8 + $0x8] sm:$0xff] %v2154
    %2215 = vst [vmem:[#allocation8 + $0x10] sm:$0xff] %v2159
    %2216 = vst [vmem:[#allocation8 + $0x18] sm:$0xff] %v2162
    %2217 = vst [vmem:[#allocation8 + $0x20] sm:$0xff] %v2167
    %2218 = vst [vmem:[#allocation8 + $0x28] sm:$0xff] %v2170
    %2219 = vst [vmem:[#allocation8 + $0x30] sm:$0xff] %v2175
    %2220 = vst [vmem:[#allocation8 + $0x38] sm:$0xff] %v2178
    %2221 = vst [vmem:[#allocation8 + $0x40] sm:$0xff] %v2183
    %2222 = vst [vmem:[#allocation8 + $0x48] sm:$0xff] %v2186
    %2223 = vst [vmem:[#allocation8 + $0x50] sm:$0xff] %v2191
    %2224 = vst [vmem:[#allocation8 + $0x58] sm:$0xff] %v2194
    %2225 = vst [vmem:[#allocation8 + $0x60] sm:$0xff] %v2199
    %2226 = vst [vmem:[#allocation8 + $0x68] sm:$0xff] %v2202
    %2227 = vst [vmem:[#allocation8 + $0x70] sm:$0xff] %v2207
    %2228 = vst [vmem:[#allocation8 + $0x78] sm:$0xff] %v2210
    // Predicated region
    $region42: #{tpu_custom_call.1} parent=1 // pred_check
      _
    $region43: #{tpu_custom_call.1} parent=1 // pred_check_branch
      %2230 = sbr.rel (0) target = $region45
    $region44: #{tpu_custom_call.1} parent=1 // pred_region
      %s2232 = ssub.s32 2048, 2048
      %2233 = vsyncadd [#allocation4], %s2232
      %s2234 = sshll.u32 [#allocation8], 4
      %s2235 = int_to_ptr.vmem [resolvable:$true] %s2234
      %2240 = dma.vmem_to_hbm [thread:$0]  %s2235, 2048, %s7, [#allocation4], 128, 128, 8
    $region45: #{tpu_custom_call.1} parent=1 // pred_fallthru
      _
    // Predicated region
    $region46: #{tpu_custom_call.1} parent=1 // pred_check
      _
    $region47: #{tpu_custom_call.1} parent=1 // pred_check_branch
      %2242 = sbr.rel (0) target = $region49
    $region48: #{tpu_custom_call.1} parent=1 // pred_region
      %2243 = dma.done [#allocation4], 2048
    $region49: #{tpu_custom_call.1} parent=1 // pred_fallthru
      _
    %2244 = vsyncpa [#allocation3], 1
    %2245 = vsyncpa [#allocation6], 1
    %2246 = vsyncpa [#allocation4], 1

</llo_original>
